<compile_context>
chip_gen: v7x
topology: tpu7x:2x2x1
jax: 0.10.0
libtpu: 0.0.40
codegen_flags: <defaults>
</compile_context>

<pallas_src>
import functools
import math

import jax
import jax.numpy as jnp
from jax.experimental import pallas as pl
from jax.experimental.pallas import tpu as pltpu


# ----------------------------------------------------------------------------- in-kernel helpers

def _layernorm(x, g, b):
    # x: (M, H) f32; LayerNorm over last axis, eps=1e-12 (BERT default)
    mu = jnp.mean(x, axis=-1, keepdims=True)
    xc = x - mu
    var = jnp.mean(xc * xc, axis=-1, keepdims=True)
    return xc * jax.lax.rsqrt(var + 1e-12) * g + b


def _gelu(y):
    # TODO(synk): HF BertIntermediate uses exact erf-GELU; tanh approximation used here
    # (differs at ~1e-3 level) because erf has no clean Mosaic lowering.
    return 0.5 * y * (1.0 + jnp.tanh(0.7978845608028654 * (y + 0.044715 * y * y * y)))


# ----------------------------------------------------------------------------- fused kernel

def _bert_fused_kernel(mask_ref, we_ref, te_ref, pe_ref, eg_ref, eb_ref,
                       wqkv_ref, bqkv_ref, wo_ref, bo_ref, ln1g_ref, ln1b_ref,
                       wi_ref, bi_ref, wo2_ref, bo2_ref, ln2g_ref, ln2b_ref,
                       pw_ref, pb_ref, cw_ref, cb_ref,
                       logits_ref, x_sc, *, num_heads, head_dim):
    """One grid step == one encoder layer of one batch element.

    Grid: (batch, layer) with layer innermost ("arbitrary"); the running activation
    x_sc (S, H) f32 stays resident in VMEM across the layer axis.
    """
    l = pl.program_id(1)
    H = num_heads * head_dim

    # ---- layer 0: embeddings sum + LayerNorm (initializes the resident activation) ----
    @pl.when(l == 0)
    def _():
        x_sc[...] = _layernorm(we_ref[...] + te_ref[...] + pe_ref[...],
                               eg_ref[...], eb_ref[...])

    x = x_sc[...]                                    # (S, H) f32
    xb = x.astype(jnp.bfloat16)
    add_mask = mask_ref[0]                           # (1, S) additive mask (broadcast in-kernel)

    # ---- attention: fused QKV projection (N = 3H, lane-dense) ----
    qkv = jnp.dot(xb, wqkv_ref[0], preferred_element_type=jnp.float32) + bqkv_ref[0]
    q = qkv[:, :H]                                   # 1/sqrt(d) already folded into Wq/bq
    k = qkv[:, H:2 * H]
    v = qkv[:, 2 * H:3 * H]

    # TODO(synk): for nh >> 2 batch the heads into the lane dimension instead of unrolling.
    ctx_heads = []
    for h in range(num_heads):                       # tiny trace-time unroll (nh == 2)
        sl = slice(h * head_dim, (h + 1) * head_dim)
        s = jax.lax.dot_general(q[:, sl].astype(jnp.bfloat16), k[:, sl].astype(jnp.bfloat16),
                                (((1,), (1,)), ((), ())),
                                preferred_element_type=jnp.float32)      # (S, S)
        s = s + add_mask
        s = s - jnp.max(s, axis=-1, keepdims=True)
        p = jnp.exp(s)
        p = p / jnp.sum(p, axis=-1, keepdims=True)   # exact division (f32 softmax)
        ctx_heads.append(jnp.dot(p.astype(jnp.bfloat16), v[:, sl].astype(jnp.bfloat16),
                                 preferred_element_type=jnp.float32))    # (S, d)
    ctx = jnp.concatenate(ctx_heads, axis=-1)        # (S, H)

    # ---- single output projection, residual + LayerNorm 1 ----
    attn = jnp.dot(ctx.astype(jnp.bfloat16), wo_ref[0],
                   preferred_element_type=jnp.float32) + bo_ref[0]
    x1 = _layernorm(x + attn, ln1g_ref[0], ln1b_ref[0])

    # ---- feed forward: GELU(x1 @ wi + bi) @ wo2 + bo2, residual + LayerNorm 2 ----
    inter = _gelu(jnp.dot(x1.astype(jnp.bfloat16), wi_ref[0],
                          preferred_element_type=jnp.float32) + bi_ref[0])
    ffn = jnp.dot(inter.astype(jnp.bfloat16), wo2_ref[0],
                  preferred_element_type=jnp.float32) + bo2_ref[0]
    x2 = _layernorm(x1 + ffn, ln2g_ref[0], ln2b_ref[0])
    x_sc[...] = x2                                   # stays in VMEM for the next layer

    # ---- last layer: pooler (tanh on CLS) + classifier head (lane-padded logits) ----
    @pl.when(l == pl.num_programs(1) - 1)
    def _():
        cls = x2[0:1, :]                             # (1, H) CLS hidden state
        pooled = jnp.tanh(jnp.dot(cls.astype(jnp.bfloat16), pw_ref[...],
                                  preferred_element_type=jnp.float32) + pb_ref[...])
        logits = jnp.dot(pooled.astype(jnp.bfloat16), cw_ref[...],
                         preferred_element_type=jnp.float32) + cb_ref[...]
        logits_ref[0] = logits.astype(logits_ref.dtype)


# ----------------------------------------------------------------------------- wrapper

def bert_classifier_forward(packed, input_ids, token_type_ids, attention_mask, cfg):
    B, S = input_ids.shape
    H = cfg["hidden"]
    nh = cfg["heads"]
    d = H // nh
    L = cfg["layers"]
    I = packed["wi"].shape[-1]
    n_pad = packed["cls_w"].shape[-1]

    # Embedding gathers (plain-JAX glue); everything else happens inside one pallas_call.
    we = jnp.take(packed["word_emb"], input_ids, axis=0).reshape(B * S, H)
    te = jnp.take(packed["type_emb"], token_type_ids, axis=0).reshape(B * S, H)
    pe = packed["pos_emb"][:S]
    add_mask = ((1.0 - attention_mask.astype(jnp.float32)) * -10000.0).reshape(B, 1, S)

    kernel = functools.partial(_bert_fused_kernel, num_heads=nh, head_dim=d)

    row2 = lambda b, l: (b, 0)        # per-batch 2D blocks (constant over l -> fetched once/b)
    shared2 = lambda b, l: (0, 0)     # shared 2D blocks (fetched once)
    layer3 = lambda b, l: (l, 0, 0)   # per-layer stacked weights (streamed along layer axis)

    logits3 = pl.pallas_call(
        kernel,
        out_shape=jax.ShapeDtypeStruct((B, 1, n_pad), jnp.float32),
        grid_spec=pltpu.PrefetchScalarGridSpec(
            num_scalar_prefetch=0,
            grid=(B, L),
            in_specs=[
                pl.BlockSpec((1, 1, S), lambda b, l: (b, 0, 0)),   # additive mask
                pl.BlockSpec((S, H), row2),                        # word embeddings (batch b)
                pl.BlockSpec((S, H), row2),                        # type embeddings (batch b)
                pl.BlockSpec((S, H), shared2),                     # positional embeddings
                pl.BlockSpec((1, H), shared2),                     # emb LN gamma
                pl.BlockSpec((1, H), shared2),                     # emb LN beta
                pl.BlockSpec((1, H, 3 * H), layer3),               # packed QKV weights (bf16)
                pl.BlockSpec((1, 1, 3 * H), layer3),               # packed QKV biases (f32)
                pl.BlockSpec((1, H, H), layer3),                   # attention output proj
                pl.BlockSpec((1, 1, H), layer3),                   # bo
                pl.BlockSpec((1, 1, H), layer3),                   # ln1 gamma
                pl.BlockSpec((1, 1, H), layer3),                   # ln1 beta
                pl.BlockSpec((1, H, I), layer3),                   # wi
                pl.BlockSpec((1, 1, I), layer3),                   # bi
                pl.BlockSpec((1, I, H), layer3),                   # wo2
                pl.BlockSpec((1, 1, H), layer3),                   # bo2
                pl.BlockSpec((1, 1, H), layer3),                   # ln2 gamma
                pl.BlockSpec((1, 1, H), layer3),                   # ln2 beta
                pl.BlockSpec((H, H), shared2),                     # pooler weight (bf16)
                pl.BlockSpec((1, H), shared2),                     # pooler bias
                pl.BlockSpec((H, n_pad), shared2),                 # classifier weight (padded)
                pl.BlockSpec((1, n_pad), shared2),                 # classifier bias (padded)
            ],
            out_specs=pl.BlockSpec((1, 1, n_pad), lambda b, l: (b, 0, 0)),
            scratch_shapes=[pltpu.VMEM((S, H), jnp.float32)],      # resident activation
        ),
        # batch axis parallel (feeds v7x's 2nd TensorCore), layer axis sequential.
        compiler_params=pltpu.CompilerParams(
            dimension_semantics=("parallel", "arbitrary")),
    )(add_mask, we, te, pe, packed["emb_g"], packed["emb_b"],
      packed["wqkv"], packed["bqkv"], packed["wo"], packed["bo"],
      packed["ln1_g"], packed["ln1_b"], packed["wi"], packed["bi"],
      packed["wo2"], packed["bo2"], packed["ln2_g"], packed["ln2_b"],
      packed["pool_w"], packed["pool_b"], packed["cls_w"], packed["cls_b"])

    return logits3[:, 0, :cfg["n_classes"]]


# ----------------------------------------------------------------------------- params

CFG = dict(vocab=100, max_pos=64, type_vocab=2, hidden=128, heads=2,
           intermediate=256, layers=2, n_classes=2)


def init_params(key, cfg):
    H, I = cfg["hidden"], cfg["intermediate"]

    def nrm(k, shape):
        return 0.02 * jax.random.normal(k, shape, dtype=jnp.float32)

    keys = jax.random.split(key, 8 + cfg["layers"])
    params = {
        "word_emb": nrm(keys[0], (cfg["vocab"], H)),
        "pos_emb": nrm(keys[1], (cfg["max_pos"], H)),
        "type_emb": nrm(keys[2], (cfg["type_vocab"], H)),
        "emb_ln_g": jnp.ones((H,), jnp.float32),
        "emb_ln_b": jnp.zeros((H,), jnp.float32),
        "pool_w": nrm(keys[3], (H, H)),
        "pool_b": jnp.zeros((H,), jnp.float32),
        "cls_w": nrm(keys[4], (H, cfg["n_classes"])),
        "cls_b": jnp.zeros((cfg["n_classes"],), jnp.float32),
        "layers": [],
    }
    for li in range(cfg["layers"]):
        lk = jax.random.split(keys[8 + li], 6)
        params["layers"].append({
            "wq": nrm(lk[0], (H, H)), "bq": jnp.zeros((H,), jnp.float32),
            "wk": nrm(lk[1], (H, H)), "bk": jnp.zeros((H,), jnp.float32),
            "wv": nrm(lk[2], (H, H)), "bv": jnp.zeros((H,), jnp.float32),
            "wo": nrm(lk[3], (H, H)), "bo": jnp.zeros((H,), jnp.float32),
            "ln1_g": jnp.ones((H,), jnp.float32), "ln1_b": jnp.zeros((H,), jnp.float32),
            "wi": nrm(lk[4], (H, I)), "bi": jnp.zeros((I,), jnp.float32),
            "wo2": nrm(lk[5], (I, H)), "bo2": jnp.zeros((H,), jnp.float32),
            "ln2_g": jnp.ones((H,), jnp.float32), "ln2_b": jnp.zeros((H,), jnp.float32),
        })
    return params


def pack_params(params, cfg):
    """Pack weights ONCE (outside jit): fused QKV with 1/sqrt(d) folded into Wq/bq,
    per-layer weights stacked on a leading layer axis, bf16 matmul operands,
    classifier padded to 128 lanes."""
    H = cfg["hidden"]
    nh = cfg["heads"]
    d = H // nh
    scale = 1.0 / math.sqrt(d)
    n_pad = ((cfg["n_classes"] + 127) // 128) * 128

    stacked = {k: [] for k in ("wqkv", "bqkv", "wo", "bo", "ln1_g", "ln1_b",
                               "wi", "bi", "wo2", "bo2", "ln2_g", "ln2_b")}
    for lyr in params["layers"]:
        wqkv = jnp.concatenate([lyr["wq"] * scale, lyr["wk"], lyr["wv"]], axis=1)   # (H, 3H)
        bqkv = jnp.concatenate([lyr["bq"] * scale, lyr["bk"], lyr["bv"]]).reshape(1, 3 * H)
        stacked["wqkv"].append(wqkv.astype(jnp.bfloat16))
        stacked["bqkv"].append(bqkv)
        stacked["wo"].append(lyr["wo"].astype(jnp.bfloat16))
        stacked["bo"].append(lyr["bo"].reshape(1, H))
        stacked["ln1_g"].append(lyr["ln1_g"].reshape(1, H))
        stacked["ln1_b"].append(lyr["ln1_b"].reshape(1, H))
        stacked["wi"].append(lyr["wi"].astype(jnp.bfloat16))
        stacked["bi"].append(lyr["bi"].reshape(1, -1))
        stacked["wo2"].append(lyr["wo2"].astype(jnp.bfloat16))
        stacked["bo2"].append(lyr["bo2"].reshape(1, H))
        stacked["ln2_g"].append(lyr["ln2_g"].reshape(1, H))
        stacked["ln2_b"].append(lyr["ln2_b"].reshape(1, H))

    packed = {k: jnp.stack(v, axis=0) for k, v in stacked.items()}    # leading layer axis
    packed.update(
        word_emb=params["word_emb"], pos_emb=params["pos_emb"], type_emb=params["type_emb"],
        emb_g=params["emb_ln_g"].reshape(1, H), emb_b=params["emb_ln_b"].reshape(1, H),
        pool_w=params["pool_w"].astype(jnp.bfloat16), pool_b=params["pool_b"].reshape(1, H),
        cls_w=jnp.zeros((H, n_pad), jnp.float32)
              .at[:, :cfg["n_classes"]].set(params["cls_w"]).astype(jnp.bfloat16),
        cls_b=jnp.zeros((1, n_pad), jnp.float32).at[0, :cfg["n_classes"]].set(params["cls_b"]),
    )
    return packed


# ----------------------------------------------------------------------------- main

if __name__ == "__main__":
    cfg = CFG
    B, S = 2, 8

    key = jax.random.PRNGKey(0)
    pkey, ikey = jax.random.split(key)
    params = init_params(pkey, cfg)
    packed = pack_params(params, cfg)            # packing hoisted out of the jitted forward

    input_ids = jax.random.randint(ikey, (B, S), 0, cfg["vocab"], dtype=jnp.int32)
    token_type_ids = jnp.concatenate(
        [jnp.zeros((B, S // 2), jnp.int32), jnp.ones((B, S // 2), jnp.int32)], axis=1)
    attention_mask = jnp.array(
        [[1, 1, 1, 1, 1, 1, 1, 1],
         [1, 1, 1, 1, 1, 1, 0, 0]], dtype=jnp.int32)   # second example has padding

    fwd = jax.jit(functools.partial(bert_classifier_forward, cfg=cfg))
    logits = fwd(packed, input_ids, token_type_ids, attention_mask)
    logits = jax.block_until_ready(logits)
    assert logits.shape == (B, cfg["n_classes"])
    assert bool(jnp.all(jnp.isfinite(logits)))
    print("KERNEL_OK")
</pallas_src>

<mosaic_0001>
module attributes {stable_mosaic.version = 11 : i64} {
  func.func @_bert_fused_kernel(%arg0: i32, %arg1: i32, %arg2: memref<1x1x8xf32, #tpu.memory_space<vmem>>, %arg3: memref<8x128xf32, #tpu.memory_space<vmem>>, %arg4: memref<8x128xf32, #tpu.memory_space<vmem>>, %arg5: memref<8x128xf32, #tpu.memory_space<vmem>>, %arg6: memref<1x128xf32, #tpu.memory_space<vmem>>, %arg7: memref<1x128xf32, #tpu.memory_space<vmem>>, %arg8: memref<1x128x384xbf16, #tpu.memory_space<vmem>>, %arg9: memref<1x1x384xf32, #tpu.memory_space<vmem>>, %arg10: memref<1x128x128xbf16, #tpu.memory_space<vmem>>, %arg11: memref<1x1x128xf32, #tpu.memory_space<vmem>>, %arg12: memref<1x1x128xf32, #tpu.memory_space<vmem>>, %arg13: memref<1x1x128xf32, #tpu.memory_space<vmem>>, %arg14: memref<1x128x256xbf16, #tpu.memory_space<vmem>>, %arg15: memref<1x1x256xf32, #tpu.memory_space<vmem>>, %arg16: memref<1x256x128xbf16, #tpu.memory_space<vmem>>, %arg17: memref<1x1x128xf32, #tpu.memory_space<vmem>>, %arg18: memref<1x1x128xf32, #tpu.memory_space<vmem>>, %arg19: memref<1x1x128xf32, #tpu.memory_space<vmem>>, %arg20: memref<128x128xbf16, #tpu.memory_space<vmem>>, %arg21: memref<1x128xf32, #tpu.memory_space<vmem>>, %arg22: memref<128x128xbf16, #tpu.memory_space<vmem>>, %arg23: memref<1x128xf32, #tpu.memory_space<vmem>>, %arg24: memref<1x1x128xf32, #tpu.memory_space<vmem>>, %arg25: memref<8x128xf32, #tpu.memory_space<vmem>>) attributes {dimension_semantics = [#tpu.dimension_semantics<parallel>, #tpu.dimension_semantics<arbitrary>], iteration_bounds = array<i64: 2, 2>, scalar_prefetch = 0 : i64, scratch_operands = 1 : i64, tpu.core_type = #tpu.core_type<tc>, window_params = [{transform_indices = @transform_0, window_bounds = array<i64: 1, 1, 8>}, {transform_indices = @transform_1, window_bounds = array<i64: 8, 128>}, {transform_indices = @transform_2, window_bounds = array<i64: 8, 128>}, {pipeline_mode = #tpu.pipeline_mode<synchronous>, transform_indices = @transform_3, window_bounds = array<i64: 8, 128>}, {pipeline_mode = #tpu.pipeline_mode<synchronous>, transform_indices = @transform_4, window_bounds = array<i64: 1, 128>}, {pipeline_mode = #tpu.pipeline_mode<synchronous>, transform_indices = @transform_5, window_bounds = array<i64: 1, 128>}, {transform_indices = @transform_6, window_bounds = array<i64: 1, 128, 384>}, {transform_indices = @transform_7, window_bounds = array<i64: 1, 1, 384>}, {transform_indices = @transform_8, window_bounds = array<i64: 1, 128, 128>}, {transform_indices = @transform_9, window_bounds = array<i64: 1, 1, 128>}, {transform_indices = @transform_10, window_bounds = array<i64: 1, 1, 128>}, {transform_indices = @transform_11, window_bounds = array<i64: 1, 1, 128>}, {transform_indices = @transform_12, window_bounds = array<i64: 1, 128, 256>}, {transform_indices = @transform_13, window_bounds = array<i64: 1, 1, 256>}, {transform_indices = @transform_14, window_bounds = array<i64: 1, 256, 128>}, {transform_indices = @transform_15, window_bounds = array<i64: 1, 1, 128>}, {transform_indices = @transform_16, window_bounds = array<i64: 1, 1, 128>}, {transform_indices = @transform_17, window_bounds = array<i64: 1, 1, 128>}, {pipeline_mode = #tpu.pipeline_mode<synchronous>, transform_indices = @transform_18, window_bounds = array<i64: 128, 128>}, {pipeline_mode = #tpu.pipeline_mode<synchronous>, transform_indices = @transform_19, window_bounds = array<i64: 1, 128>}, {pipeline_mode = #tpu.pipeline_mode<synchronous>, transform_indices = @transform_20, window_bounds = array<i64: 128, 128>}, {pipeline_mode = #tpu.pipeline_mode<synchronous>, transform_indices = @transform_21, window_bounds = array<i64: 1, 128>}, {transform_indices = @transform_22, window_bounds = array<i64: 1, 1, 128>}]} {
    %c0_i32 = arith.constant 0 : i32
    %0 = arith.cmpi eq, %arg1, %c0_i32 : i32
    %1 = arith.extui %0 : i1 to i32
    %c0_i32_0 = arith.constant 0 : i32
    %2 = arith.cmpi ne, %1, %c0_i32_0 : i32
    scf.if %2 {
      %c0_69 = arith.constant 0 : index
      %c0_70 = arith.constant 0 : index
      %149 = vector.load %arg3[%c0_69, %c0_70] : memref<8x128xf32, #tpu.memory_space<vmem>>, vector<8x128xf32>
      %c0_71 = arith.constant 0 : index
      %c0_72 = arith.constant 0 : index
      %150 = vector.load %arg4[%c0_71, %c0_72] : memref<8x128xf32, #tpu.memory_space<vmem>>, vector<8x128xf32>
      %151 = arith.addf %149, %150 : vector<8x128xf32>
      %c0_73 = arith.constant 0 : index
      %c0_74 = arith.constant 0 : index
      %152 = vector.load %arg5[%c0_73, %c0_74] : memref<8x128xf32, #tpu.memory_space<vmem>>, vector<8x128xf32>
      %153 = arith.addf %151, %152 : vector<8x128xf32>
      %c0_75 = arith.constant 0 : index
      %c0_76 = arith.constant 0 : index
      %154 = vector.load %arg6[%c0_75, %c0_76] : memref<1x128xf32, #tpu.memory_space<vmem>>, vector<1x128xf32>
      %c0_77 = arith.constant 0 : index
      %c0_78 = arith.constant 0 : index
      %155 = vector.load %arg7[%c0_77, %c0_78] : memref<1x128xf32, #tpu.memory_space<vmem>>, vector<1x128xf32>
      %cst_79 = arith.constant dense<0.000000e+00> : vector<8xf32>
      %156 = vector.multi_reduction <add>, %153, %cst_79 [1] : vector<8x128xf32> to vector<8xf32>
      %157 = vector.shape_cast %156 : vector<8xf32> to vector<8x1xf32>
      %cst_80 = arith.constant 1.280000e+02 : f32
      %158 = vector.broadcast %cst_80 : f32 to vector<8x1xf32>
      %159 = arith.divf %157, %158 : vector<8x1xf32>
      %160 = vector.broadcast %159 : vector<8x1xf32> to vector<8x128xf32>
      %161 = arith.subf %153, %160 : vector<8x128xf32>
      %162 = arith.mulf %161, %161 : vector<8x128xf32>
      %cst_81 = arith.constant dense<0.000000e+00> : vector<8xf32>
      %163 = vector.multi_reduction <add>, %162, %cst_81 [1] : vector<8x128xf32> to vector<8xf32>
      %164 = vector.shape_cast %163 : vector<8xf32> to vector<8x1xf32>
      %cst_82 = arith.constant 1.280000e+02 : f32
      %165 = vector.broadcast %cst_82 : f32 to vector<8x1xf32>
      %166 = arith.divf %164, %165 : vector<8x1xf32>
      %cst_83 = arith.constant 9.99999996E-13 : f32
      %167 = vector.broadcast %cst_83 : f32 to vector<8x1xf32>
      %168 = arith.addf %166, %167 : vector<8x1xf32>
      %169 = math.rsqrt %168 : vector<8x1xf32>
      %170 = vector.broadcast %169 : vector<8x1xf32> to vector<8x128xf32>
      %171 = arith.mulf %161, %170 : vector<8x128xf32>
      %172 = vector.broadcast %154 : vector<1x128xf32> to vector<8x128xf32>
      %173 = arith.mulf %171, %172 : vector<8x128xf32>
      %174 = vector.broadcast %155 : vector<1x128xf32> to vector<8x128xf32>
      %175 = arith.addf %173, %174 : vector<8x128xf32>
      %c0_84 = arith.constant 0 : index
      %c0_85 = arith.constant 0 : index
      %176 = vector.load %arg25[%c0_84, %c0_85] : memref<8x128xf32, #tpu.memory_space<vmem>>, vector<8x128xf32>
      tpu.vector_store %arg25[%c0_84, %c0_85], %175 {strides = array<i32>} : memref<8x128xf32, #tpu.memory_space<vmem>>, vector<8x128xf32>,
    } else {
    }
    %c0 = arith.constant 0 : index
    %c0_1 = arith.constant 0 : index
    %3 = vector.load %arg25[%c0, %c0_1] : memref<8x128xf32, #tpu.memory_space<vmem>>, vector<8x128xf32>
    %4 = arith.truncf %3 : vector<8x128xf32> to vector<8x128xbf16>
    %c0_2 = arith.constant 0 : index
    %c0_3 = arith.constant 0 : index
    %c0_4 = arith.constant 0 : index
    %5 = vector.load %arg2[%c0_2, %c0_3, %c0_4] : memref<1x1x8xf32, #tpu.memory_space<vmem>>, vector<1x1x8xf32>
    %6 = vector.shape_cast %5 : vector<1x1x8xf32> to vector<1x8xf32>
    %c0_5 = arith.constant 0 : index
    %c0_6 = arith.constant 0 : index
    %c0_7 = arith.constant 0 : index
    %7 = vector.load %arg8[%c0_5, %c0_6, %c0_7] : memref<1x128x384xbf16, #tpu.memory_space<vmem>>, vector<1x128x384xbf16>
    %8 = vector.shape_cast %7 : vector<1x128x384xbf16> to vector<128x384xbf16>
    %cst = arith.constant dense<0.000000e+00> : vector<8x384xf32>
    %9 = tpu.matmul %4, %8, %cst {dimension_numbers = #tpu.dot_dimension_numbers<[1], [0], [0], [1], [0, 0, 1, 1], [], []>} : vector<8x128xbf16>, vector<128x384xbf16>, vector<8x384xf32> -> vector<8x384xf32>
    %c0_8 = arith.constant 0 : index
    %c0_9 = arith.constant 0 : index
    %c0_10 = arith.constant 0 : index
    %10 = vector.load %arg9[%c0_8, %c0_9, %c0_10] : memref<1x1x384xf32, #tpu.memory_space<vmem>>, vector<1x1x384xf32>
    %11 = vector.shape_cast %10 : vector<1x1x384xf32> to vector<1x384xf32>
    %12 = vector.broadcast %11 : vector<1x384xf32> to vector<8x384xf32>
    %13 = arith.addf %9, %12 : vector<8x384xf32>
    %14 = vector.extract_strided_slice %13 {offsets = [0, 0], sizes = [8, 128], strides = [1, 1]} : vector<8x384xf32> to vector<8x128xf32>
    %15 = vector.extract_strided_slice %13 {offsets = [0, 128], sizes = [8, 128], strides = [1, 1]} : vector<8x384xf32> to vector<8x128xf32>
    %16 = vector.extract_strided_slice %13 {offsets = [0, 256], sizes = [8, 128], strides = [1, 1]} : vector<8x384xf32> to vector<8x128xf32>
    %17 = vector.extract_strided_slice %14 {offsets = [0, 0], sizes = [8, 64], strides = [1, 1]} : vector<8x128xf32> to vector<8x64xf32>
    %18 = arith.truncf %17 : vector<8x64xf32> to vector<8x64xbf16>
    %19 = vector.extract_strided_slice %15 {offsets = [0, 0], sizes = [8, 64], strides = [1, 1]} : vector<8x128xf32> to vector<8x64xf32>
    %20 = arith.truncf %19 : vector<8x64xf32> to vector<8x64xbf16>
    %cst_11 = arith.constant dense<0.000000e+00> : vector<8x8xf32>
    %21 = tpu.matmul %18, %20, %cst_11 {dimension_numbers = #tpu.dot_dimension_numbers<[1], [1], [0], [0], [0, 0, 1, 0], [], []>} : vector<8x64xbf16>, vector<8x64xbf16>, vector<8x8xf32> -> vector<8x8xf32>
    %22 = vector.broadcast %6 : vector<1x8xf32> to vector<8x8xf32>
    %23 = arith.addf %21, %22 : vector<8x8xf32>
    %cst_12 = arith.constant dense<0xFF800000> : vector<8xf32>
    %24 = vector.multi_reduction <maximumf>, %23, %cst_12 [1] : vector<8x8xf32> to vector<8xf32>
    %25 = vector.shape_cast %24 : vector<8xf32> to vector<8x1xf32>
    %26 = vector.broadcast %25 : vector<8x1xf32> to vector<8x8xf32>
    %27 = arith.subf %23, %26 : vector<8x8xf32>
    %28 = math.exp %27 : vector<8x8xf32>
    %cst_13 = arith.constant dense<0.000000e+00> : vector<8xf32>
    %29 = vector.multi_reduction <add>, %28, %cst_13 [1] : vector<8x8xf32> to vector<8xf32>
    %30 = vector.shape_cast %29 : vector<8xf32> to vector<8x1xf32>
    %31 = vector.broadcast %30 : vector<8x1xf32> to vector<8x8xf32>
    %32 = arith.divf %28, %31 : vector<8x8xf32>
    %33 = arith.truncf %32 : vector<8x8xf32> to vector<8x8xbf16>
    %34 = vector.extract_strided_slice %16 {offsets = [0, 0], sizes = [8, 64], strides = [1, 1]} : vector<8x128xf32> to vector<8x64xf32>
    %35 = arith.truncf %34 : vector<8x64xf32> to vector<8x64xbf16>
    %cst_14 = arith.constant dense<0.000000e+00> : vector<8x64xf32>
    %36 = tpu.matmul %33, %35, %cst_14 {dimension_numbers = #tpu.dot_dimension_numbers<[1], [0], [0], [1], [0, 0, 1, 1], [], []>} : vector<8x8xbf16>, vector<8x64xbf16>, vector<8x64xf32> -> vector<8x64xf32>
    %37 = vector.extract_strided_slice %14 {offsets = [0, 64], sizes = [8, 64], strides = [1, 1]} : vector<8x128xf32> to vector<8x64xf32>
    %38 = arith.truncf %37 : vector<8x64xf32> to vector<8x64xbf16>
    %39 = vector.extract_strided_slice %15 {offsets = [0, 64], sizes = [8, 64], strides = [1, 1]} : vector<8x128xf32> to vector<8x64xf32>
    %40 = arith.truncf %39 : vector<8x64xf32> to vector<8x64xbf16>
    %cst_15 = arith.constant dense<0.000000e+00> : vector<8x8xf32>
    %41 = tpu.matmul %38, %40, %cst_15 {dimension_numbers = #tpu.dot_dimension_numbers<[1], [1], [0], [0], [0, 0, 1, 0], [], []>} : vector<8x64xbf16>, vector<8x64xbf16>, vector<8x8xf32> -> vector<8x8xf32>
    %42 = vector.broadcast %6 : vector<1x8xf32> to vector<8x8xf32>
    %43 = arith.addf %41, %42 : vector<8x8xf32>
    %cst_16 = arith.constant dense<0xFF800000> : vector<8xf32>
    %44 = vector.multi_reduction <maximumf>, %43, %cst_16 [1] : vector<8x8xf32> to vector<8xf32>
    %45 = vector.shape_cast %44 : vector<8xf32> to vector<8x1xf32>
    %46 = vector.broadcast %45 : vector<8x1xf32> to vector<8x8xf32>
    %47 = arith.subf %43, %46 : vector<8x8xf32>
    %48 = math.exp %47 : vector<8x8xf32>
    %cst_17 = arith.constant dense<0.000000e+00> : vector<8xf32>
    %49 = vector.multi_reduction <add>, %48, %cst_17 [1] : vector<8x8xf32> to vector<8xf32>
    %50 = vector.shape_cast %49 : vector<8xf32> to vector<8x1xf32>
    %51 = vector.broadcast %50 : vector<8x1xf32> to vector<8x8xf32>
    %52 = arith.divf %48, %51 : vector<8x8xf32>
    %53 = arith.truncf %52 : vector<8x8xf32> to vector<8x8xbf16>
    %54 = vector.extract_strided_slice %16 {offsets = [0, 64], sizes = [8, 64], strides = [1, 1]} : vector<8x128xf32> to vector<8x64xf32>
    %55 = arith.truncf %54 : vector<8x64xf32> to vector<8x64xbf16>
    %cst_18 = arith.constant dense<0.000000e+00> : vector<8x64xf32>
    %56 = tpu.matmul %53, %55, %cst_18 {dimension_numbers = #tpu.dot_dimension_numbers<[1], [0], [0], [1], [0, 0, 1, 1], [], []>} : vector<8x8xbf16>, vector<8x64xbf16>, vector<8x64xf32> -> vector<8x64xf32>
    %57 = tpu.concatenate %36, %56 in 1 : vector<8x64xf32>, vector<8x64xf32> -> vector<8x128xf32>
    %58 = arith.truncf %57 : vector<8x128xf32> to vector<8x128xbf16>
    %c0_19 = arith.constant 0 : index
    %c0_20 = arith.constant 0 : index
    %c0_21 = arith.constant 0 : index
    %59 = vector.load %arg10[%c0_19, %c0_20, %c0_21] : memref<1x128x128xbf16, #tpu.memory_space<vmem>>, vector<1x128x128xbf16>
    %60 = vector.shape_cast %59 : vector<1x128x128xbf16> to vector<128x128xbf16>
    %cst_22 = arith.constant dense<0.000000e+00> : vector<8x128xf32>
    %61 = tpu.matmul %58, %60, %cst_22 {dimension_numbers = #tpu.dot_dimension_numbers<[1], [0], [0], [1], [0, 0, 1, 1], [], []>} : vector<8x128xbf16>, vector<128x128xbf16>, vector<8x128xf32> -> vector<8x128xf32>
    %c0_23 = arith.constant 0 : index
    %c0_24 = arith.constant 0 : index
    %c0_25 = arith.constant 0 : index
    %62 = vector.load %arg11[%c0_23, %c0_24, %c0_25] : memref<1x1x128xf32, #tpu.memory_space<vmem>>, vector<1x1x128xf32>
    %63 = vector.shape_cast %62 : vector<1x1x128xf32> to vector<1x128xf32>
    %64 = vector.broadcast %63 : vector<1x128xf32> to vector<8x128xf32>
    %65 = arith.addf %61, %64 : vector<8x128xf32>
    %66 = arith.addf %3, %65 : vector<8x128xf32>
    %c0_26 = arith.constant 0 : index
    %c0_27 = arith.constant 0 : index
    %c0_28 = arith.constant 0 : index
    %67 = vector.load %arg12[%c0_26, %c0_27, %c0_28] : memref<1x1x128xf32, #tpu.memory_space<vmem>>, vector<1x1x128xf32>
    %68 = vector.shape_cast %67 : vector<1x1x128xf32> to vector<1x128xf32>
    %c0_29 = arith.constant 0 : index
    %c0_30 = arith.constant 0 : index
    %c0_31 = arith.constant 0 : index
    %69 = vector.load %arg13[%c0_29, %c0_30, %c0_31] : memref<1x1x128xf32, #tpu.memory_space<vmem>>, vector<1x1x128xf32>
    %70 = vector.shape_cast %69 : vector<1x1x128xf32> to vector<1x128xf32>
    %cst_32 = arith.constant dense<0.000000e+00> : vector<8xf32>
    %71 = vector.multi_reduction <add>, %66, %cst_32 [1] : vector<8x128xf32> to vector<8xf32>
    %72 = vector.shape_cast %71 : vector<8xf32> to vector<8x1xf32>
    %cst_33 = arith.constant 1.280000e+02 : f32
    %73 = vector.broadcast %cst_33 : f32 to vector<8x1xf32>
    %74 = arith.divf %72, %73 : vector<8x1xf32>
    %75 = vector.broadcast %74 : vector<8x1xf32> to vector<8x128xf32>
    %76 = arith.subf %66, %75 : vector<8x128xf32>
    %77 = arith.mulf %76, %76 : vector<8x128xf32>
    %cst_34 = arith.constant dense<0.000000e+00> : vector<8xf32>
    %78 = vector.multi_reduction <add>, %77, %cst_34 [1] : vector<8x128xf32> to vector<8xf32>
    %79 = vector.shape_cast %78 : vector<8xf32> to vector<8x1xf32>
    %cst_35 = arith.constant 1.280000e+02 : f32
    %80 = vector.broadcast %cst_35 : f32 to vector<8x1xf32>
    %81 = arith.divf %79, %80 : vector<8x1xf32>
    %cst_36 = arith.constant 9.99999996E-13 : f32
    %82 = vector.broadcast %cst_36 : f32 to vector<8x1xf32>
    %83 = arith.addf %81, %82 : vector<8x1xf32>
    %84 = math.rsqrt %83 : vector<8x1xf32>
    %85 = vector.broadcast %84 : vector<8x1xf32> to vector<8x128xf32>
    %86 = arith.mulf %76, %85 : vector<8x128xf32>
    %87 = vector.broadcast %68 : vector<1x128xf32> to vector<8x128xf32>
    %88 = arith.mulf %86, %87 : vector<8x128xf32>
    %89 = vector.broadcast %70 : vector<1x128xf32> to vector<8x128xf32>
    %90 = arith.addf %88, %89 : vector<8x128xf32>
    %91 = arith.truncf %90 : vector<8x128xf32> to vector<8x128xbf16>
    %c0_37 = arith.constant 0 : index
    %c0_38 = arith.constant 0 : index
    %c0_39 = arith.constant 0 : index
    %92 = vector.load %arg14[%c0_37, %c0_38, %c0_39] : memref<1x128x256xbf16, #tpu.memory_space<vmem>>, vector<1x128x256xbf16>
    %93 = vector.shape_cast %92 : vector<1x128x256xbf16> to vector<128x256xbf16>
    %cst_40 = arith.constant dense<0.000000e+00> : vector<8x256xf32>
    %94 = tpu.matmul %91, %93, %cst_40 {dimension_numbers = #tpu.dot_dimension_numbers<[1], [0], [0], [1], [0, 0, 1, 1], [], []>} : vector<8x128xbf16>, vector<128x256xbf16>, vector<8x256xf32> -> vector<8x256xf32>
    %c0_41 = arith.constant 0 : index
    %c0_42 = arith.constant 0 : index
    %c0_43 = arith.constant 0 : index
    %95 = vector.load %arg15[%c0_41, %c0_42, %c0_43] : memref<1x1x256xf32, #tpu.memory_space<vmem>>, vector<1x1x256xf32>
    %96 = vector.shape_cast %95 : vector<1x1x256xf32> to vector<1x256xf32>
    %97 = vector.broadcast %96 : vector<1x256xf32> to vector<8x256xf32>
    %98 = arith.addf %94, %97 : vector<8x256xf32>
    %cst_44 = arith.constant 5.000000e-01 : f32
    %99 = vector.broadcast %cst_44 : f32 to vector<8x256xf32>
    %100 = arith.mulf %99, %98 : vector<8x256xf32>
    %cst_45 = arith.constant 4.471500e-02 : f32
    %101 = vector.broadcast %cst_45 : f32 to vector<8x256xf32>
    %102 = arith.mulf %101, %98 : vector<8x256xf32>
    %103 = arith.mulf %102, %98 : vector<8x256xf32>
    %104 = arith.mulf %103, %98 : vector<8x256xf32>
    %105 = arith.addf %98, %104 : vector<8x256xf32>
    %cst_46 = arith.constant 0.797884583 : f32
    %106 = vector.broadcast %cst_46 : f32 to vector<8x256xf32>
    %107 = arith.mulf %106, %105 : vector<8x256xf32>
    %108 = math.tanh %107 : vector<8x256xf32>
    %cst_47 = arith.constant 1.000000e+00 : f32
    %109 = vector.broadcast %cst_47 : f32 to vector<8x256xf32>
    %110 = arith.addf %109, %108 : vector<8x256xf32>
    %111 = arith.mulf %100, %110 : vector<8x256xf32>
    %112 = arith.truncf %111 : vector<8x256xf32> to vector<8x256xbf16>
    %c0_48 = arith.constant 0 : index
    %c0_49 = arith.constant 0 : index
    %c0_50 = arith.constant 0 : index
    %113 = vector.load %arg16[%c0_48, %c0_49, %c0_50] : memref<1x256x128xbf16, #tpu.memory_space<vmem>>, vector<1x256x128xbf16>
    %114 = vector.shape_cast %113 : vector<1x256x128xbf16> to vector<256x128xbf16>
    %cst_51 = arith.constant dense<0.000000e+00> : vector<8x128xf32>
    %115 = tpu.matmul %112, %114, %cst_51 {dimension_numbers = #tpu.dot_dimension_numbers<[1], [0], [0], [1], [0, 0, 1, 1], [], []>} : vector<8x256xbf16>, vector<256x128xbf16>, vector<8x128xf32> -> vector<8x128xf32>
    %c0_52 = arith.constant 0 : index
    %c0_53 = arith.constant 0 : index
    %c0_54 = arith.constant 0 : index
    %116 = vector.load %arg17[%c0_52, %c0_53, %c0_54] : memref<1x1x128xf32, #tpu.memory_space<vmem>>, vector<1x1x128xf32>
    %117 = vector.shape_cast %116 : vector<1x1x128xf32> to vector<1x128xf32>
    %118 = vector.broadcast %117 : vector<1x128xf32> to vector<8x128xf32>
    %119 = arith.addf %115, %118 : vector<8x128xf32>
    %120 = arith.addf %90, %119 : vector<8x128xf32>
    %c0_55 = arith.constant 0 : index
    %c0_56 = arith.constant 0 : index
    %c0_57 = arith.constant 0 : index
    %121 = vector.load %arg18[%c0_55, %c0_56, %c0_57] : memref<1x1x128xf32, #tpu.memory_space<vmem>>, vector<1x1x128xf32>
    %122 = vector.shape_cast %121 : vector<1x1x128xf32> to vector<1x128xf32>
    %c0_58 = arith.constant 0 : index
    %c0_59 = arith.constant 0 : index
    %c0_60 = arith.constant 0 : index
    %123 = vector.load %arg19[%c0_58, %c0_59, %c0_60] : memref<1x1x128xf32, #tpu.memory_space<vmem>>, vector<1x1x128xf32>
    %124 = vector.shape_cast %123 : vector<1x1x128xf32> to vector<1x128xf32>
    %cst_61 = arith.constant dense<0.000000e+00> : vector<8xf32>
    %125 = vector.multi_reduction <add>, %120, %cst_61 [1] : vector<8x128xf32> to vector<8xf32>
    %126 = vector.shape_cast %125 : vector<8xf32> to vector<8x1xf32>
    %cst_62 = arith.constant 1.280000e+02 : f32
    %127 = vector.broadcast %cst_62 : f32 to vector<8x1xf32>
    %128 = arith.divf %126, %127 : vector<8x1xf32>
    %129 = vector.broadcast %128 : vector<8x1xf32> to vector<8x128xf32>
    %130 = arith.subf %120, %129 : vector<8x128xf32>
    %131 = arith.mulf %130, %130 : vector<8x128xf32>
    %cst_63 = arith.constant dense<0.000000e+00> : vector<8xf32>
    %132 = vector.multi_reduction <add>, %131, %cst_63 [1] : vector<8x128xf32> to vector<8xf32>
    %133 = vector.shape_cast %132 : vector<8xf32> to vector<8x1xf32>
    %cst_64 = arith.constant 1.280000e+02 : f32
    %134 = vector.broadcast %cst_64 : f32 to vector<8x1xf32>
    %135 = arith.divf %133, %134 : vector<8x1xf32>
    %cst_65 = arith.constant 9.99999996E-13 : f32
    %136 = vector.broadcast %cst_65 : f32 to vector<8x1xf32>
    %137 = arith.addf %135, %136 : vector<8x1xf32>
    %138 = math.rsqrt %137 : vector<8x1xf32>
    %139 = vector.broadcast %138 : vector<8x1xf32> to vector<8x128xf32>
    %140 = arith.mulf %130, %139 : vector<8x128xf32>
    %141 = vector.broadcast %122 : vector<1x128xf32> to vector<8x128xf32>
    %142 = arith.mulf %140, %141 : vector<8x128xf32>
    %143 = vector.broadcast %124 : vector<1x128xf32> to vector<8x128xf32>
    %144 = arith.addf %142, %143 : vector<8x128xf32>
    %c0_66 = arith.constant 0 : index
    %c0_67 = arith.constant 0 : index
    %145 = vector.load %arg25[%c0_66, %c0_67] : memref<8x128xf32, #tpu.memory_space<vmem>>, vector<8x128xf32>
    tpu.vector_store %arg25[%c0_66, %c0_67], %144 {strides = array<i32>} : memref<8x128xf32, #tpu.memory_space<vmem>>, vector<8x128xf32>,
    %c1_i32 = arith.constant 1 : i32
    %146 = arith.cmpi eq, %arg1, %c1_i32 : i32
    %147 = arith.extui %146 : i1 to i32
    %c0_i32_68 = arith.constant 0 : i32
    %148 = arith.cmpi ne, %147, %c0_i32_68 : i32
    scf.if %148 {
      %149 = vector.extract_strided_slice %144 {offsets = [0, 0], sizes = [1, 128], strides = [1, 1]} : vector<8x128xf32> to vector<1x128xf32>
      %150 = arith.truncf %149 : vector<1x128xf32> to vector<1x128xbf16>
      %c0_69 = arith.constant 0 : index
      %c0_70 = arith.constant 0 : index
      %151 = vector.load %arg20[%c0_69, %c0_70] : memref<128x128xbf16, #tpu.memory_space<vmem>>, vector<128x128xbf16>
      %cst_71 = arith.constant dense<0.000000e+00> : vector<1x128xf32>
      %152 = tpu.matmul %150, %151, %cst_71 {dimension_numbers = #tpu.dot_dimension_numbers<[1], [0], [0], [1], [0, 0, 1, 1], [], []>} : vector<1x128xbf16>, vector<128x128xbf16>, vector<1x128xf32> -> vector<1x128xf32>
      %c0_72 = arith.constant 0 : index
      %c0_73 = arith.constant 0 : index
      %153 = vector.load %arg21[%c0_72, %c0_73] : memref<1x128xf32, #tpu.memory_space<vmem>>, vector<1x128xf32>
      %154 = arith.addf %152, %153 : vector<1x128xf32>
      %155 = math.tanh %154 : vector<1x128xf32>
      %156 = arith.truncf %155 : vector<1x128xf32> to vector<1x128xbf16>
      %c0_74 = arith.constant 0 : index
      %c0_75 = arith.constant 0 : index
      %157 = vector.load %arg22[%c0_74, %c0_75] : memref<128x128xbf16, #tpu.memory_space<vmem>>, vector<128x128xbf16>
      %cst_76 = arith.constant dense<0.000000e+00> : vector<1x128xf32>
      %158 = tpu.matmul %156, %157, %cst_76 {dimension_numbers = #tpu.dot_dimension_numbers<[1], [0], [0], [1], [0, 0, 1, 1], [], []>} : vector<1x128xbf16>, vector<128x128xbf16>, vector<1x128xf32> -> vector<1x128xf32>
      %c0_77 = arith.constant 0 : index
      %c0_78 = arith.constant 0 : index
      %159 = vector.load %arg23[%c0_77, %c0_78] : memref<1x128xf32, #tpu.memory_space<vmem>>, vector<1x128xf32>
      %160 = arith.addf %158, %159 : vector<1x128xf32>
      %c0_79 = arith.constant 0 : index
      %c0_80 = arith.constant 0 : index
      %c0_81 = arith.constant 0 : index
      %161 = vector.load %arg24[%c0_79, %c0_80, %c0_81] : memref<1x1x128xf32, #tpu.memory_space<vmem>>, vector<1x1x128xf32>
      %162 = vector.shape_cast %161 : vector<1x1x128xf32> to vector<1x128xf32>
      %163 = vector.shape_cast %160 : vector<1x128xf32> to vector<1x1x128xf32>
      tpu.vector_store %arg24[%c0_79, %c0_80, %c0_81], %163 {strides = array<i32>} : memref<1x1x128xf32, #tpu.memory_space<vmem>>, vector<1x1x128xf32>,
    } else {
    }
    return
  }
  func.func @transform_0(%arg0: i32, %arg1: i32) -> (i32, i32, i32) {
    %c0_i32 = arith.constant 0 : i32
    %c0_i32_0 = arith.constant 0 : i32
    %c0_i32_1 = arith.constant 0 : i32
    return %arg0, %c0_i32, %c0_i32_0 : i32, i32, i32
  }
  func.func @transform_1(%arg0: i32, %arg1: i32) -> (i32, i32) {
    %c0_i32 = arith.constant 0 : i32
    %c0_i32_0 = arith.constant 0 : i32
    return %arg0, %c0_i32 : i32, i32
  }
  func.func @transform_2(%arg0: i32, %arg1: i32) -> (i32, i32) {
    %c0_i32 = arith.constant 0 : i32
    %c0_i32_0 = arith.constant 0 : i32
    return %arg0, %c0_i32 : i32, i32
  }
  func.func @transform_3(%arg0: i32, %arg1: i32) -> (i32, i32) {
    %c0_i32 = arith.constant 0 : i32
    %c0_i32_0 = arith.constant 0 : i32
    %c0_i32_1 = arith.constant 0 : i32
    return %c0_i32, %c0_i32_0 : i32, i32
  }
  func.func @transform_4(%arg0: i32, %arg1: i32) -> (i32, i32) {
    %c0_i32 = arith.constant 0 : i32
    %c0_i32_0 = arith.constant 0 : i32
    %c0_i32_1 = arith.constant 0 : i32
    return %c0_i32, %c0_i32_0 : i32, i32
  }
  func.func @transform_5(%arg0: i32, %arg1: i32) -> (i32, i32) {
    %c0_i32 = arith.constant 0 : i32
    %c0_i32_0 = arith.constant 0 : i32
    %c0_i32_1 = arith.constant 0 : i32
    return %c0_i32, %c0_i32_0 : i32, i32
  }
  func.func @transform_6(%arg0: i32, %arg1: i32) -> (i32, i32, i32) {
    %c0_i32 = arith.constant 0 : i32
    %c0_i32_0 = arith.constant 0 : i32
    %c0_i32_1 = arith.constant 0 : i32
    return %arg1, %c0_i32, %c0_i32_0 : i32, i32, i32
  }
  func.func @transform_7(%arg0: i32, %arg1: i32) -> (i32, i32, i32) {
    %c0_i32 = arith.constant 0 : i32
    %c0_i32_0 = arith.constant 0 : i32
    %c0_i32_1 = arith.constant 0 : i32
    return %arg1, %c0_i32, %c0_i32_0 : i32, i32, i32
  }
  func.func @transform_8(%arg0: i32, %arg1: i32) -> (i32, i32, i32) {
    %c0_i32 = arith.constant 0 : i32
    %c0_i32_0 = arith.constant 0 : i32
    %c0_i32_1 = arith.constant 0 : i32
    return %arg1, %c0_i32, %c0_i32_0 : i32, i32, i32
  }
  func.func @transform_9(%arg0: i32, %arg1: i32) -> (i32, i32, i32) {
    %c0_i32 = arith.constant 0 : i32
    %c0_i32_0 = arith.constant 0 : i32
    %c0_i32_1 = arith.constant 0 : i32
    return %arg1, %c0_i32, %c0_i32_0 : i32, i32, i32
  }
  func.func @transform_10(%arg0: i32, %arg1: i32) -> (i32, i32, i32) {
    %c0_i32 = arith.constant 0 : i32
    %c0_i32_0 = arith.constant 0 : i32
    %c0_i32_1 = arith.constant 0 : i32
    return %arg1, %c0_i32, %c0_i32_0 : i32, i32, i32
  }
  func.func @transform_11(%arg0: i32, %arg1: i32) -> (i32, i32, i32) {
    %c0_i32 = arith.constant 0 : i32
    %c0_i32_0 = arith.constant 0 : i32
    %c0_i32_1 = arith.constant 0 : i32
    return %arg1, %c0_i32, %c0_i32_0 : i32, i32, i32
  }
  func.func @transform_12(%arg0: i32, %arg1: i32) -> (i32, i32, i32) {
    %c0_i32 = arith.constant 0 : i32
    %c0_i32_0 = arith.constant 0 : i32
    %c0_i32_1 = arith.constant 0 : i32
    return %arg1, %c0_i32, %c0_i32_0 : i32, i32, i32
  }
  func.func @transform_13(%arg0: i32, %arg1: i32) -> (i32, i32, i32) {
    %c0_i32 = arith.constant 0 : i32
    %c0_i32_0 = arith.constant 0 : i32
    %c0_i32_1 = arith.constant 0 : i32
    return %arg1, %c0_i32, %c0_i32_0 : i32, i32, i32
  }
  func.func @transform_14(%arg0: i32, %arg1: i32) -> (i32, i32, i32) {
    %c0_i32 = arith.constant 0 : i32
    %c0_i32_0 = arith.constant 0 : i32
    %c0_i32_1 = arith.constant 0 : i32
    return %arg1, %c0_i32, %c0_i32_0 : i32, i32, i32
  }
  func.func @transform_15(%arg0: i32, %arg1: i32) -> (i32, i32, i32) {
    %c0_i32 = arith.constant 0 : i32
    %c0_i32_0 = arith.constant 0 : i32
    %c0_i32_1 = arith.constant 0 : i32
    return %arg1, %c0_i32, %c0_i32_0 : i32, i32, i32
  }
  func.func @transform_16(%arg0: i32, %arg1: i32) -> (i32, i32, i32) {
    %c0_i32 = arith.constant 0 : i32
    %c0_i32_0 = arith.constant 0 : i32
    %c0_i32_1 = arith.constant 0 : i32
    return %arg1, %c0_i32, %c0_i32_0 : i32, i32, i32
  }
  func.func @transform_17(%arg0: i32, %arg1: i32) -> (i32, i32, i32) {
    %c0_i32 = arith.constant 0 : i32
    %c0_i32_0 = arith.constant 0 : i32
    %c0_i32_1 = arith.constant 0 : i32
    return %arg1, %c0_i32, %c0_i32_0 : i32, i32, i32
  }
  func.func @transform_18(%arg0: i32, %arg1: i32) -> (i32, i32) {
    %c0_i32 = arith.constant 0 : i32
    %c0_i32_0 = arith.constant 0 : i32
    %c0_i32_1 = arith.constant 0 : i32
    return %c0_i32, %c0_i32_0 : i32, i32
  }
  func.func @transform_19(%arg0: i32, %arg1: i32) -> (i32, i32) {
    %c0_i32 = arith.constant 0 : i32
    %c0_i32_0 = arith.constant 0 : i32
    %c0_i32_1 = arith.constant 0 : i32
    return %c0_i32, %c0_i32_0 : i32, i32
  }
  func.func @transform_20(%arg0: i32, %arg1: i32) -> (i32, i32) {
    %c0_i32 = arith.constant 0 : i32
    %c0_i32_0 = arith.constant 0 : i32
    %c0_i32_1 = arith.constant 0 : i32
    return %c0_i32, %c0_i32_0 : i32, i32
  }
  func.func @transform_21(%arg0: i32, %arg1: i32) -> (i32, i32) {
    %c0_i32 = arith.constant 0 : i32
    %c0_i32_0 = arith.constant 0 : i32
    %c0_i32_1 = arith.constant 0 : i32
    return %c0_i32, %c0_i32_0 : i32, i32
  }
  func.func @transform_22(%arg0: i32, %arg1: i32) -> (i32, i32, i32) {
    %c0_i32 = arith.constant 0 : i32
    %c0_i32_0 = arith.constant 0 : i32
    %c0_i32_1 = arith.constant 0 : i32
    return %arg0, %c0_i32, %c0_i32_0 : i32, i32, i32
  }
}

</mosaic_0001>

<llo_original>
// kernel: bert_classifier_forward.1
$region0: #{bert_classifier_forward.1}
  #allocation0 [shape = 'u32[]', space=smem, size = 0x4, offset = 0x4, fixed_abs, tag = 'smem constant byte address 0x4 - core index']
  #allocation1 [shape = 'u32[144,128]{1,0:T(1,128)}', space=vmem, size = 0x12000, scoped, tag = 'internal scratch']
  #allocation2 [shape = 'f32[8,128]{1,0:T(8,128)}', space=vmem, size = 0x1000, scoped, tag = 'scratch operand']
  %s0 = inlined_call_operand.vmem [shape: f32[2,1,8], index: 0, kind: input, shape index: {}]
  %s1 = inlined_call_operand.vmem [shape: f32[16,128], index: 1, kind: input, shape index: {}]
  %s2 = inlined_call_operand.vmem [shape: f32[16,128], index: 2, kind: input, shape index: {}]
  %s3 = inlined_call_operand.vmem [shape: f32[8,128], index: 3, kind: input, shape index: {}]
  %s4 = inlined_call_operand.vmem [shape: f32[1,128], index: 4, kind: input, shape index: {}]
  %s5 = inlined_call_operand.vmem [shape: f32[1,128], index: 5, kind: input, shape index: {}]
  %s6 = inlined_call_operand.hbm [shape: bf16[2,128,384], index: 6, kind: input, shape index: {}]
  %s7 = inlined_call_operand.vmem [shape: f32[2,1,384], index: 7, kind: input, shape index: {}]
  %s8 = inlined_call_operand.vmem [shape: bf16[2,128,128], index: 8, kind: input, shape index: {}]
  %s9 = inlined_call_operand.vmem [shape: f32[2,1,128], index: 9, kind: input, shape index: {}]
  %s10 = inlined_call_operand.vmem [shape: f32[2,1,128], index: 10, kind: input, shape index: {}]
  %s11 = inlined_call_operand.vmem [shape: f32[2,1,128], index: 11, kind: input, shape index: {}]
  %s12 = inlined_call_operand.vmem [shape: bf16[2,128,256], index: 12, kind: input, shape index: {}]
  %s13 = inlined_call_operand.vmem [shape: f32[2,1,256], index: 13, kind: input, shape index: {}]
  %s14 = inlined_call_operand.hbm [shape: bf16[2,256,128], index: 14, kind: input, shape index: {}]
  %s15 = inlined_call_operand.vmem [shape: f32[2,1,128], index: 15, kind: input, shape index: {}]
  %s16 = inlined_call_operand.vmem [shape: f32[2,1,128], index: 16, kind: input, shape index: {}]
  %s17 = inlined_call_operand.vmem [shape: f32[2,1,128], index: 17, kind: input, shape index: {}]
  %s18 = inlined_call_operand.vmem [shape: bf16[128,128], index: 18, kind: input, shape index: {}]
  %s19 = inlined_call_operand.vmem [shape: f32[1,128], index: 19, kind: input, shape index: {}]
  %s20 = inlined_call_operand.hbm [shape: bf16[128,128], index: 20, kind: input, shape index: {}]
  %s21 = inlined_call_operand.vmem [shape: f32[1,128], index: 21, kind: input, shape index: {}]
  %s22 = inlined_call_operand.hbm [shape: f32[2,1,128], index: 22, kind: output, shape index: {}]
  %s23 = sld [smem:[#allocation0]]
  $region141: #{bert_classifier_forward.1} parent=0
    _
  %s25 = ssub.s32 1, %s23
  %s26 = scalar_select 0, %s25, %s23
  $region1: #{bert_classifier_forward.1} parent=0
    #allocation3 [shape = 'u8[196608]{0}', space=vmem, size = 0x30000, scoped, tag = 'input window, operand 6']
    #allocation4 [shape = 's32[2]{0}', space=sflag, size = 0x8, scoped, tag = 'scoped memory for bert_classifier_forward.1']
    #allocation5 [shape = 's32[2]{0}', space=sflag, size = 0x8, scoped, tag = 'scoped memory for bert_classifier_forward.1']
    #allocation6 [shape = 'u8[131072]{0}', space=vmem, size = 0x20000, scoped, tag = 'input window, operand 14']
    #allocation7 [shape = 's32[2]{0}', space=sflag, size = 0x8, scoped, tag = 'scoped memory for bert_classifier_forward.1']
    #allocation8 [shape = 'u8[32768]{0}', space=vmem, size = 0x8000, scoped, tag = 'input window, operand 20, single buffered']
    #allocation9 [shape = 'u8[1024]{0}', space=vmem, size = 0x400, scoped, tag = 'output window, operand 0']
    %27 = vsyncpa [#allocation4], 0
    %s28 = scalar_lea.sflag [#allocation4], 1
    %29 = vsyncpa %s28, 0
    %30 = vsyncpa [#allocation7], 0
    %s31 = scalar_lea.sflag [#allocation7], 1
    %32 = vsyncpa %s31, 0
    %33 = vsyncpa [#allocation5], 0
    %s34 = scalar_lea.sflag [#allocation5], 1
    %35 = vsyncpa %s34, 0
    loop: start=0, step=1, limit=6
    $region2: #{bert_classifier_forward.1} parent=1 // loop_pre_header
      _
    $region3: #{bert_classifier_forward.1} parent=1 // loop_header
      %s37 = sphi 0, %s41
      %p38 = scmp.ge.s32.totalorder %s37, 6
      %s44 = sphi 0, %s56
      %s45 = sphi 0, %s52
      %s46 = sphi 0, %s44
      %s47 = sphi 0, %s45
      %s48 = sphi 0, %s46
      %s49 = sphi 0, %s47
      %s59 = sphi 0, %s61
      %s62 = sphi 0, %s59
      %s63 = sphi 0, %s62
      %s79 = sphi 0, %s63
      %s85 = sphi 0, %s87
      %s88 = sphi 0, %s85
      %s89 = sphi 0, %s88
      %s105 = sphi 0, %s89
      %s111 = sphi 0, %s113
      %s114 = sphi 0, %s111
      %s115 = sphi 0, %s114
      %s131 = sphi 0, %s115
      %s135 = sphi 0, %s135
      %s137 = sphi 0, %s135
      %s138 = sphi 0, %s137
      %s152 = sphi 0, %s138
      %s156 = sphi 0, %s156
      %s158 = sphi 0, %s156
      %s159 = sphi 0, %s158
      %s173 = sphi 0, %s159
      %s177 = sphi 0, %s177
      %s179 = sphi 0, %s177
      %s180 = sphi 0, %s179
      %s194 = sphi 0, %s180
      %s200 = sphi 0, %s202
      %s203 = sphi 0, %s200
      %s204 = sphi 0, %s203
      %s220 = sphi 0, %s204
      %s226 = sphi 0, %s228
      %s229 = sphi 0, %s226
      %s230 = sphi 0, %s229
      %s246 = sphi 0, %s230
      %s252 = sphi 0, %s254
      %s255 = sphi 0, %s252
      %s256 = sphi 0, %s255
      %s272 = sphi 0, %s256
      %s278 = sphi 0, %s280
      %s281 = sphi 0, %s278
      %s282 = sphi 0, %s281
      %s298 = sphi 0, %s282
      %s304 = sphi 0, %s306
      %s307 = sphi 0, %s304
      %s308 = sphi 0, %s307
      %s324 = sphi 0, %s308
      %s330 = sphi 0, %s332
      %s333 = sphi 0, %s330
      %s334 = sphi 0, %s333
      %s350 = sphi 0, %s334
      %s356 = sphi 0, %s358
      %s359 = sphi 0, %s356
      %s360 = sphi 0, %s359
      %s376 = sphi 0, %s360
      %s382 = sphi 0, %s384
      %s385 = sphi 0, %s382
      %s386 = sphi 0, %s385
      %s402 = sphi 0, %s386
      %s408 = sphi 0, %s410
      %s411 = sphi 0, %s408
      %s412 = sphi 0, %s411
      %s428 = sphi 0, %s412
      %s434 = sphi 0, %s436
      %s437 = sphi 0, %s434
      %s438 = sphi 0, %s437
      %s454 = sphi 0, %s438
      %s460 = sphi 0, %s462
      %s463 = sphi 0, %s460
      %s464 = sphi 0, %s463
      %s480 = sphi 0, %s464
      %s486 = sphi 0, %s488
      %s489 = sphi 0, %s486
      %s490 = sphi 0, %s489
      %s506 = sphi 0, %s490
      %s510 = sphi 0, %s510
      %s512 = sphi 0, %s510
      %s513 = sphi 0, %s512
      %s527 = sphi 0, %s513
      %s531 = sphi 0, %s531
      %s533 = sphi 0, %s531
      %s534 = sphi 0, %s533
      %s548 = sphi 0, %s534
      %s552 = sphi 0, %s552
      %s554 = sphi 0, %s552
      %s555 = sphi 0, %s554
      %s569 = sphi 0, %s555
      %s573 = sphi 0, %s573
      %s575 = sphi 0, %s573
      %s576 = sphi 0, %s575
      %s590 = sphi 0, %s576
      %s596 = sphi 0, %s598
      %s599 = sphi 0, %s596
      %s600 = sphi 0, %s599
      %s616 = sphi 0, %s600
    $region4: #{bert_classifier_forward.1} parent=1 // loop_header_branch
      %40 = sbr.rel (%p38) target = $region8
    $region5: #{bert_classifier_forward.1} parent=1 // loop_body
      %s42 = ssub.s32 %s37, 1
      %s43 = ssub.s32 %s37, 2
      %s50 = sadd.s32 1, %s45
      %p51 = scmp.ge.s32.totalorder %s50, 2
      %s52 = scalar_select %p51, 0, %s50
      %s53 = sadd.s32 1, %s44
      %s54 = scalar_select %p51, %s53, %s44
      %p55 = scmp.ge.s32.totalorder %s54, 2
      %s56 = scalar_select %p55, 0, %s54
      %s57 = ssub.s32 %s44, %s56
      %p58 = scmp.eq.s32.totalorder %s57, 0
      %s60 = sadd.s32 %s59, 1
      %s61 = scalar_select %p58, %s59, %s60
      %p64 = pneg %p58
      %p65 = scmp.eq.s32.totalorder %s37, 3
      %p66 = por %p64, %p65
      %p67 = scmp.ne.s32.totalorder %s59, %s62
      %p68 = scmp.eq.s32.totalorder %s37, 0
      %p69 = por %p67, %p68
      %p70 = scmp.ne.s32.totalorder %s59, %s62
      %p71 = scmp.eq.s32.totalorder %s42, 3
      %p72 = por %p70, %p71
      %p73 = scmp.ne.s32.totalorder %s62, %s63
      %p74 = scmp.eq.s32.totalorder %s42, 0
      %p75 = por %p73, %p74
      %p76 = scmp.ne.s32.totalorder %s62, %s63
      %p77 = scmp.eq.s32.totalorder %s43, 3
      %p78 = por %p76, %p77
      %p80 = scmp.ne.s32.totalorder %s63, %s79
      %p81 = scmp.eq.s32.totalorder %s43, 0
      %p82 = por %p80, %p81
      %s83 = ssub.s32 %s44, %s56
      %p84 = scmp.eq.s32.totalorder %s83, 0
      %s86 = sadd.s32 %s85, 1
      %s87 = scalar_select %p84, %s85, %s86
      %p90 = pneg %p84
      %p91 = scmp.eq.s32.totalorder %s37, 3
      %p92 = por %p90, %p91
      %p93 = scmp.ne.s32.totalorder %s85, %s88
      %p94 = scmp.eq.s32.totalorder %s37, 0
      %p95 = por %p93, %p94
      %p96 = scmp.ne.s32.totalorder %s85, %s88
      %p97 = scmp.eq.s32.totalorder %s42, 3
      %p98 = por %p96, %p97
      %p99 = scmp.ne.s32.totalorder %s88, %s89
      %p100 = scmp.eq.s32.totalorder %s42, 0
      %p101 = por %p99, %p100
      %p102 = scmp.ne.s32.totalorder %s88, %s89
      %p103 = scmp.eq.s32.totalorder %s43, 3
      %p104 = por %p102, %p103
      %p106 = scmp.ne.s32.totalorder %s89, %s105
      %p107 = scmp.eq.s32.totalorder %s43, 0
      %p108 = por %p106, %p107
      %s109 = ssub.s32 %s44, %s56
      %p110 = scmp.eq.s32.totalorder %s109, 0
      %s112 = sadd.s32 %s111, 1
      %s113 = scalar_select %p110, %s111, %s112
      %p116 = pneg %p110
      %p117 = scmp.eq.s32.totalorder %s37, 3
      %p118 = por %p116, %p117
      %p119 = scmp.ne.s32.totalorder %s111, %s114
      %p120 = scmp.eq.s32.totalorder %s37, 0
      %p121 = por %p119, %p120
      %p122 = scmp.ne.s32.totalorder %s111, %s114
      %p123 = scmp.eq.s32.totalorder %s42, 3
      %p124 = por %p122, %p123
      %p125 = scmp.ne.s32.totalorder %s114, %s115
      %p126 = scmp.eq.s32.totalorder %s42, 0
      %p127 = por %p125, %p126
      %p128 = scmp.ne.s32.totalorder %s114, %s115
      %p129 = scmp.eq.s32.totalorder %s43, 3
      %p130 = por %p128, %p129
      %p132 = scmp.ne.s32.totalorder %s115, %s131
      %p133 = scmp.eq.s32.totalorder %s43, 0
      %p134 = por %p132, %p133
      %s136 = sadd.s32 %s135, 1
      %p139 = scmp.eq.s32.totalorder %s37, 3
      %p140 = scmp.ne.s32.totalorder %s135, %s137
      %p141 = scmp.eq.s32.totalorder %s37, 0
      %p142 = por %p140, %p141
      %p143 = scmp.ne.s32.totalorder %s135, %s137
      %p144 = scmp.eq.s32.totalorder %s42, 3
      %p145 = por %p143, %p144
      %p146 = scmp.ne.s32.totalorder %s137, %s138
      %p147 = scmp.eq.s32.totalorder %s42, 0
      %p148 = por %p146, %p147
      %p149 = scmp.ne.s32.totalorder %s137, %s138
      %p150 = scmp.eq.s32.totalorder %s43, 3
      %p151 = por %p149, %p150
      %p153 = scmp.ne.s32.totalorder %s138, %s152
      %p154 = scmp.eq.s32.totalorder %s43, 0
      %p155 = por %p153, %p154
      %s157 = sadd.s32 %s156, 1
      %p160 = scmp.eq.s32.totalorder %s37, 3
      %p161 = scmp.ne.s32.totalorder %s156, %s158
      %p162 = scmp.eq.s32.totalorder %s37, 0
      %p163 = por %p161, %p162
      %p164 = scmp.ne.s32.totalorder %s156, %s158
      %p165 = scmp.eq.s32.totalorder %s42, 3
      %p166 = por %p164, %p165
      %p167 = scmp.ne.s32.totalorder %s158, %s159
      %p168 = scmp.eq.s32.totalorder %s42, 0
      %p169 = por %p167, %p168
      %p170 = scmp.ne.s32.totalorder %s158, %s159
      %p171 = scmp.eq.s32.totalorder %s43, 3
      %p172 = por %p170, %p171
      %p174 = scmp.ne.s32.totalorder %s159, %s173
      %p175 = scmp.eq.s32.totalorder %s43, 0
      %p176 = por %p174, %p175
      %s178 = sadd.s32 %s177, 1
      %p181 = scmp.eq.s32.totalorder %s37, 3
      %p182 = scmp.ne.s32.totalorder %s177, %s179
      %p183 = scmp.eq.s32.totalorder %s37, 0
      %p184 = por %p182, %p183
      %p185 = scmp.ne.s32.totalorder %s177, %s179
      %p186 = scmp.eq.s32.totalorder %s42, 3
      %p187 = por %p185, %p186
      %p188 = scmp.ne.s32.totalorder %s179, %s180
      %p189 = scmp.eq.s32.totalorder %s42, 0
      %p190 = por %p188, %p189
      %p191 = scmp.ne.s32.totalorder %s179, %s180
      %p192 = scmp.eq.s32.totalorder %s43, 3
      %p193 = por %p191, %p192
      %p195 = scmp.ne.s32.totalorder %s180, %s194
      %p196 = scmp.eq.s32.totalorder %s43, 0
      %p197 = por %p195, %p196
      %s198 = ssub.s32 %s45, %s52
      %p199 = scmp.eq.s32.totalorder %s198, 0
      %s201 = sadd.s32 %s200, 1
      %s202 = scalar_select %p199, %s200, %s201
      %p205 = pneg %p199
      %p206 = scmp.eq.s32.totalorder %s37, 3
      %p207 = por %p205, %p206
      %p208 = scmp.ne.s32.totalorder %s200, %s203
      %p209 = scmp.eq.s32.totalorder %s37, 0
      %p210 = por %p208, %p209
      %p211 = scmp.ne.s32.totalorder %s200, %s203
      %p212 = scmp.eq.s32.totalorder %s42, 3
      %p213 = por %p211, %p212
      %p214 = scmp.ne.s32.totalorder %s203, %s204
      %p215 = scmp.eq.s32.totalorder %s42, 0
      %p216 = por %p214, %p215
      %p217 = scmp.ne.s32.totalorder %s203, %s204
      %p218 = scmp.eq.s32.totalorder %s43, 3
      %p219 = por %p217, %p218
      %p221 = scmp.ne.s32.totalorder %s204, %s220
      %p222 = scmp.eq.s32.totalorder %s43, 0
      %p223 = por %p221, %p222
      %s224 = ssub.s32 %s45, %s52
      %p225 = scmp.eq.s32.totalorder %s224, 0
      %s227 = sadd.s32 %s226, 1
      %s228 = scalar_select %p225, %s226, %s227
      %p231 = pneg %p225
      %p232 = scmp.eq.s32.totalorder %s37, 3
      %p233 = por %p231, %p232
      %p234 = scmp.ne.s32.totalorder %s226, %s229
      %p235 = scmp.eq.s32.totalorder %s37, 0
      %p236 = por %p234, %p235
      %p237 = scmp.ne.s32.totalorder %s226, %s229
      %p238 = scmp.eq.s32.totalorder %s42, 3
      %p239 = por %p237, %p238
      %p240 = scmp.ne.s32.totalorder %s229, %s230
      %p241 = scmp.eq.s32.totalorder %s42, 0
      %p242 = por %p240, %p241
      %p243 = scmp.ne.s32.totalorder %s229, %s230
      %p244 = scmp.eq.s32.totalorder %s43, 3
      %p245 = por %p243, %p244
      %p247 = scmp.ne.s32.totalorder %s230, %s246
      %p248 = scmp.eq.s32.totalorder %s43, 0
      %p249 = por %p247, %p248
      %s250 = ssub.s32 %s45, %s52
      %p251 = scmp.eq.s32.totalorder %s250, 0
      %s253 = sadd.s32 %s252, 1
      %s254 = scalar_select %p251, %s252, %s253
      %p257 = pneg %p251
      %p258 = scmp.eq.s32.totalorder %s37, 3
      %p259 = por %p257, %p258
      %p260 = scmp.ne.s32.totalorder %s252, %s255
      %p261 = scmp.eq.s32.totalorder %s37, 0
      %p262 = por %p260, %p261
      %p263 = scmp.ne.s32.totalorder %s252, %s255
      %p264 = scmp.eq.s32.totalorder %s42, 3
      %p265 = por %p263, %p264
      %p266 = scmp.ne.s32.totalorder %s255, %s256
      %p267 = scmp.eq.s32.totalorder %s42, 0
      %p268 = por %p266, %p267
      %p269 = scmp.ne.s32.totalorder %s255, %s256
      %p270 = scmp.eq.s32.totalorder %s43, 3
      %p271 = por %p269, %p270
      %p273 = scmp.ne.s32.totalorder %s256, %s272
      %p274 = scmp.eq.s32.totalorder %s43, 0
      %p275 = por %p273, %p274
      %s276 = ssub.s32 %s45, %s52
      %p277 = scmp.eq.s32.totalorder %s276, 0
      %s279 = sadd.s32 %s278, 1
      %s280 = scalar_select %p277, %s278, %s279
      %p283 = pneg %p277
      %p284 = scmp.eq.s32.totalorder %s37, 3
      %p285 = por %p283, %p284
      %p286 = scmp.ne.s32.totalorder %s278, %s281
      %p287 = scmp.eq.s32.totalorder %s37, 0
      %p288 = por %p286, %p287
      %p289 = scmp.ne.s32.totalorder %s278, %s281
      %p290 = scmp.eq.s32.totalorder %s42, 3
      %p291 = por %p289, %p290
      %p292 = scmp.ne.s32.totalorder %s281, %s282
      %p293 = scmp.eq.s32.totalorder %s42, 0
      %p294 = por %p292, %p293
      %p295 = scmp.ne.s32.totalorder %s281, %s282
      %p296 = scmp.eq.s32.totalorder %s43, 3
      %p297 = por %p295, %p296
      %p299 = scmp.ne.s32.totalorder %s282, %s298
      %p300 = scmp.eq.s32.totalorder %s43, 0
      %p301 = por %p299, %p300
      %s302 = ssub.s32 %s45, %s52
      %p303 = scmp.eq.s32.totalorder %s302, 0
      %s305 = sadd.s32 %s304, 1
      %s306 = scalar_select %p303, %s304, %s305
      %p309 = pneg %p303
      %p310 = scmp.eq.s32.totalorder %s37, 3
      %p311 = por %p309, %p310
      %p312 = scmp.ne.s32.totalorder %s304, %s307
      %p313 = scmp.eq.s32.totalorder %s37, 0
      %p314 = por %p312, %p313
      %p315 = scmp.ne.s32.totalorder %s304, %s307
      %p316 = scmp.eq.s32.totalorder %s42, 3
      %p317 = por %p315, %p316
      %p318 = scmp.ne.s32.totalorder %s307, %s308
      %p319 = scmp.eq.s32.totalorder %s42, 0
      %p320 = por %p318, %p319
      %p321 = scmp.ne.s32.totalorder %s307, %s308
      %p322 = scmp.eq.s32.totalorder %s43, 3
      %p323 = por %p321, %p322
      %p325 = scmp.ne.s32.totalorder %s308, %s324
      %p326 = scmp.eq.s32.totalorder %s43, 0
      %p327 = por %p325, %p326
      %s328 = ssub.s32 %s45, %s52
      %p329 = scmp.eq.s32.totalorder %s328, 0
      %s331 = sadd.s32 %s330, 1
      %s332 = scalar_select %p329, %s330, %s331
      %p335 = pneg %p329
      %p336 = scmp.eq.s32.totalorder %s37, 3
      %p337 = por %p335, %p336
      %p338 = scmp.ne.s32.totalorder %s330, %s333
      %p339 = scmp.eq.s32.totalorder %s37, 0
      %p340 = por %p338, %p339
      %p341 = scmp.ne.s32.totalorder %s330, %s333
      %p342 = scmp.eq.s32.totalorder %s42, 3
      %p343 = por %p341, %p342
      %p344 = scmp.ne.s32.totalorder %s333, %s334
      %p345 = scmp.eq.s32.totalorder %s42, 0
      %p346 = por %p344, %p345
      %p347 = scmp.ne.s32.totalorder %s333, %s334
      %p348 = scmp.eq.s32.totalorder %s43, 3
      %p349 = por %p347, %p348
      %p351 = scmp.ne.s32.totalorder %s334, %s350
      %p352 = scmp.eq.s32.totalorder %s43, 0
      %p353 = por %p351, %p352
      %s354 = ssub.s32 %s45, %s52
      %p355 = scmp.eq.s32.totalorder %s354, 0
      %s357 = sadd.s32 %s356, 1
      %s358 = scalar_select %p355, %s356, %s357
      %p361 = pneg %p355
      %p362 = scmp.eq.s32.totalorder %s37, 3
      %p363 = por %p361, %p362
      %p364 = scmp.ne.s32.totalorder %s356, %s359
      %p365 = scmp.eq.s32.totalorder %s37, 0
      %p366 = por %p364, %p365
      %p367 = scmp.ne.s32.totalorder %s356, %s359
      %p368 = scmp.eq.s32.totalorder %s42, 3
      %p369 = por %p367, %p368
      %p370 = scmp.ne.s32.totalorder %s359, %s360
      %p371 = scmp.eq.s32.totalorder %s42, 0
      %p372 = por %p370, %p371
      %p373 = scmp.ne.s32.totalorder %s359, %s360
      %p374 = scmp.eq.s32.totalorder %s43, 3
      %p375 = por %p373, %p374
      %p377 = scmp.ne.s32.totalorder %s360, %s376
      %p378 = scmp.eq.s32.totalorder %s43, 0
      %p379 = por %p377, %p378
      %s380 = ssub.s32 %s45, %s52
      %p381 = scmp.eq.s32.totalorder %s380, 0
      %s383 = sadd.s32 %s382, 1
      %s384 = scalar_select %p381, %s382, %s383
      %p387 = pneg %p381
      %p388 = scmp.eq.s32.totalorder %s37, 3
      %p389 = por %p387, %p388
      %p390 = scmp.ne.s32.totalorder %s382, %s385
      %p391 = scmp.eq.s32.totalorder %s37, 0
      %p392 = por %p390, %p391
      %p393 = scmp.ne.s32.totalorder %s382, %s385
      %p394 = scmp.eq.s32.totalorder %s42, 3
      %p395 = por %p393, %p394
      %p396 = scmp.ne.s32.totalorder %s385, %s386
      %p397 = scmp.eq.s32.totalorder %s42, 0
      %p398 = por %p396, %p397
      %p399 = scmp.ne.s32.totalorder %s385, %s386
      %p400 = scmp.eq.s32.totalorder %s43, 3
      %p401 = por %p399, %p400
      %p403 = scmp.ne.s32.totalorder %s386, %s402
      %p404 = scmp.eq.s32.totalorder %s43, 0
      %p405 = por %p403, %p404
      %s406 = ssub.s32 %s45, %s52
      %p407 = scmp.eq.s32.totalorder %s406, 0
      %s409 = sadd.s32 %s408, 1
      %s410 = scalar_select %p407, %s408, %s409
      %p413 = pneg %p407
      %p414 = scmp.eq.s32.totalorder %s37, 3
      %p415 = por %p413, %p414
      %p416 = scmp.ne.s32.totalorder %s408, %s411
      %p417 = scmp.eq.s32.totalorder %s37, 0
      %p418 = por %p416, %p417
      %p419 = scmp.ne.s32.totalorder %s408, %s411
      %p420 = scmp.eq.s32.totalorder %s42, 3
      %p421 = por %p419, %p420
      %p422 = scmp.ne.s32.totalorder %s411, %s412
      %p423 = scmp.eq.s32.totalorder %s42, 0
      %p424 = por %p422, %p423
      %p425 = scmp.ne.s32.totalorder %s411, %s412
      %p426 = scmp.eq.s32.totalorder %s43, 3
      %p427 = por %p425, %p426
      %p429 = scmp.ne.s32.totalorder %s412, %s428
      %p430 = scmp.eq.s32.totalorder %s43, 0
      %p431 = por %p429, %p430
      %s432 = ssub.s32 %s45, %s52
      %p433 = scmp.eq.s32.totalorder %s432, 0
      %s435 = sadd.s32 %s434, 1
      %s436 = scalar_select %p433, %s434, %s435
      %p439 = pneg %p433
      %p440 = scmp.eq.s32.totalorder %s37, 3
      %p441 = por %p439, %p440
      %p442 = scmp.ne.s32.totalorder %s434, %s437
      %p443 = scmp.eq.s32.totalorder %s37, 0
      %p444 = por %p442, %p443
      %p445 = scmp.ne.s32.totalorder %s434, %s437
      %p446 = scmp.eq.s32.totalorder %s42, 3
      %p447 = por %p445, %p446
      %p448 = scmp.ne.s32.totalorder %s437, %s438
      %p449 = scmp.eq.s32.totalorder %s42, 0
      %p450 = por %p448, %p449
      %p451 = scmp.ne.s32.totalorder %s437, %s438
      %p452 = scmp.eq.s32.totalorder %s43, 3
      %p453 = por %p451, %p452
      %p455 = scmp.ne.s32.totalorder %s438, %s454
      %p456 = scmp.eq.s32.totalorder %s43, 0
      %p457 = por %p455, %p456
      %s458 = ssub.s32 %s45, %s52
      %p459 = scmp.eq.s32.totalorder %s458, 0
      %s461 = sadd.s32 %s460, 1
      %s462 = scalar_select %p459, %s460, %s461
      %p465 = pneg %p459
      %p466 = scmp.eq.s32.totalorder %s37, 3
      %p467 = por %p465, %p466
      %p468 = scmp.ne.s32.totalorder %s460, %s463
      %p469 = scmp.eq.s32.totalorder %s37, 0
      %p470 = por %p468, %p469
      %p471 = scmp.ne.s32.totalorder %s460, %s463
      %p472 = scmp.eq.s32.totalorder %s42, 3
      %p473 = por %p471, %p472
      %p474 = scmp.ne.s32.totalorder %s463, %s464
      %p475 = scmp.eq.s32.totalorder %s42, 0
      %p476 = por %p474, %p475
      %p477 = scmp.ne.s32.totalorder %s463, %s464
      %p478 = scmp.eq.s32.totalorder %s43, 3
      %p479 = por %p477, %p478
      %p481 = scmp.ne.s32.totalorder %s464, %s480
      %p482 = scmp.eq.s32.totalorder %s43, 0
      %p483 = por %p481, %p482
      %s484 = ssub.s32 %s45, %s52
      %p485 = scmp.eq.s32.totalorder %s484, 0
      %s487 = sadd.s32 %s486, 1
      %s488 = scalar_select %p485, %s486, %s487
      %p491 = pneg %p485
      %p492 = scmp.eq.s32.totalorder %s37, 3
      %p493 = por %p491, %p492
      %p494 = scmp.ne.s32.totalorder %s486, %s489
      %p495 = scmp.eq.s32.totalorder %s37, 0
      %p496 = por %p494, %p495
      %p497 = scmp.ne.s32.totalorder %s486, %s489
      %p498 = scmp.eq.s32.totalorder %s42, 3
      %p499 = por %p497, %p498
      %p500 = scmp.ne.s32.totalorder %s489, %s490
      %p501 = scmp.eq.s32.totalorder %s42, 0
      %p502 = por %p500, %p501
      %p503 = scmp.ne.s32.totalorder %s489, %s490
      %p504 = scmp.eq.s32.totalorder %s43, 3
      %p505 = por %p503, %p504
      %p507 = scmp.ne.s32.totalorder %s490, %s506
      %p508 = scmp.eq.s32.totalorder %s43, 0
      %p509 = por %p507, %p508
      %s511 = sadd.s32 %s510, 1
      %p514 = scmp.eq.s32.totalorder %s37, 3
      %p515 = scmp.ne.s32.totalorder %s510, %s512
      %p516 = scmp.eq.s32.totalorder %s37, 0
      %p517 = por %p515, %p516
      %p518 = scmp.ne.s32.totalorder %s510, %s512
      %p519 = scmp.eq.s32.totalorder %s42, 3
      %p520 = por %p518, %p519
      %p521 = scmp.ne.s32.totalorder %s512, %s513
      %p522 = scmp.eq.s32.totalorder %s42, 0
      %p523 = por %p521, %p522
      %p524 = scmp.ne.s32.totalorder %s512, %s513
      %p525 = scmp.eq.s32.totalorder %s43, 3
      %p526 = por %p524, %p525
      %p528 = scmp.ne.s32.totalorder %s513, %s527
      %p529 = scmp.eq.s32.totalorder %s43, 0
      %p530 = por %p528, %p529
      %s532 = sadd.s32 %s531, 1
      %p535 = scmp.eq.s32.totalorder %s37, 3
      %p536 = scmp.ne.s32.totalorder %s531, %s533
      %p537 = scmp.eq.s32.totalorder %s37, 0
      %p538 = por %p536, %p537
      %p539 = scmp.ne.s32.totalorder %s531, %s533
      %p540 = scmp.eq.s32.totalorder %s42, 3
      %p541 = por %p539, %p540
      %p542 = scmp.ne.s32.totalorder %s533, %s534
      %p543 = scmp.eq.s32.totalorder %s42, 0
      %p544 = por %p542, %p543
      %p545 = scmp.ne.s32.totalorder %s533, %s534
      %p546 = scmp.eq.s32.totalorder %s43, 3
      %p547 = por %p545, %p546
      %p549 = scmp.ne.s32.totalorder %s534, %s548
      %p550 = scmp.eq.s32.totalorder %s43, 0
      %p551 = por %p549, %p550
      %s553 = sadd.s32 %s552, 1
      %p556 = scmp.eq.s32.totalorder %s37, 3
      %p557 = scmp.ne.s32.totalorder %s552, %s554
      %p558 = scmp.eq.s32.totalorder %s37, 0
      %p559 = por %p557, %p558
      %p560 = scmp.ne.s32.totalorder %s552, %s554
      %p561 = scmp.eq.s32.totalorder %s42, 3
      %p562 = por %p560, %p561
      %p563 = scmp.ne.s32.totalorder %s554, %s555
      %p564 = scmp.eq.s32.totalorder %s42, 0
      %p565 = por %p563, %p564
      %p566 = scmp.ne.s32.totalorder %s554, %s555
      %p567 = scmp.eq.s32.totalorder %s43, 3
      %p568 = por %p566, %p567
      %p570 = scmp.ne.s32.totalorder %s555, %s569
      %p571 = scmp.eq.s32.totalorder %s43, 0
      %p572 = por %p570, %p571
      %s574 = sadd.s32 %s573, 1
      %p577 = scmp.eq.s32.totalorder %s37, 3
      %p578 = scmp.ne.s32.totalorder %s573, %s575
      %p579 = scmp.eq.s32.totalorder %s37, 0
      %p580 = por %p578, %p579
      %p581 = scmp.ne.s32.totalorder %s573, %s575
      %p582 = scmp.eq.s32.totalorder %s42, 3
      %p583 = por %p581, %p582
      %p584 = scmp.ne.s32.totalorder %s575, %s576
      %p585 = scmp.eq.s32.totalorder %s42, 0
      %p586 = por %p584, %p585
      %p587 = scmp.ne.s32.totalorder %s575, %s576
      %p588 = scmp.eq.s32.totalorder %s43, 3
      %p589 = por %p587, %p588
      %p591 = scmp.ne.s32.totalorder %s576, %s590
      %p592 = scmp.eq.s32.totalorder %s43, 0
      %p593 = por %p591, %p592
      %s594 = ssub.s32 %s44, %s56
      %p595 = scmp.eq.s32.totalorder %s594, 0
      %s597 = sadd.s32 %s596, 1
      %s598 = scalar_select %p595, %s596, %s597
      %p601 = pneg %p595
      %p602 = scmp.eq.s32.totalorder %s37, 3
      %p603 = por %p601, %p602
      %p604 = scmp.ne.s32.totalorder %s596, %s599
      %p605 = scmp.eq.s32.totalorder %s37, 0
      %p606 = por %p604, %p605
      %p607 = scmp.ne.s32.totalorder %s596, %s599
      %p608 = scmp.eq.s32.totalorder %s42, 3
      %p609 = por %p607, %p608
      %p610 = scmp.ne.s32.totalorder %s599, %s600
      %p611 = scmp.eq.s32.totalorder %s42, 0
      %p612 = por %p610, %p611
      %p613 = scmp.ne.s32.totalorder %s599, %s600
      %p614 = scmp.eq.s32.totalorder %s43, 3
      %p615 = por %p613, %p614
      %p617 = scmp.ne.s32.totalorder %s600, %s616
      %p618 = scmp.eq.s32.totalorder %s43, 0
      %p619 = por %p617, %p618
      %p620 = scmp.le.s32.totalorder 1, %s37
      %p621 = scmp.lt.s32.totalorder %s37, 5
      %p622 = pnand %p620, %p621
      %p623 = pneg %p622
      // Predicated region
      $region9: #{bert_classifier_forward.1} parent=5 // pred_check
        _
      $region10: #{bert_classifier_forward.1} parent=5 // pred_check_branch
        %625 = sbr.rel (%p622) target = $region12
      $region11: #{bert_classifier_forward.1} parent=5 // pred_region
        %s626 = ssub.s32 %s37, 1
        // Predicated region
        $region13: #{bert_classifier_forward.1} parent=11 // pred_check
          %p627 = pneg %p148
        $region14: #{bert_classifier_forward.1} parent=11 // pred_check_branch
          %629 = sbr.rel (%p627) target = $region16
        $region15: #{bert_classifier_forward.1} parent=11 // pred_region
          _
        $region16: #{bert_classifier_forward.1} parent=11 // pred_fallthru
          _
        // Predicated region
        $region17: #{bert_classifier_forward.1} parent=11 // pred_check
          %p630 = pneg %p169
        $region18: #{bert_classifier_forward.1} parent=11 // pred_check_branch
          %632 = sbr.rel (%p630) target = $region20
        $region19: #{bert_classifier_forward.1} parent=11 // pred_region
          _
        $region20: #{bert_classifier_forward.1} parent=11 // pred_fallthru
          _
        // Predicated region
        $region21: #{bert_classifier_forward.1} parent=11 // pred_check
          %p633 = pneg %p190
        $region22: #{bert_classifier_forward.1} parent=11 // pred_check_branch
          %635 = sbr.rel (%p633) target = $region24
        $region23: #{bert_classifier_forward.1} parent=11 // pred_region
          _
        $region24: #{bert_classifier_forward.1} parent=11 // pred_fallthru
          _
        // Predicated region
        $region25: #{bert_classifier_forward.1} parent=11 // pred_check
          %p636 = pneg %p523
        $region26: #{bert_classifier_forward.1} parent=11 // pred_check_branch
          %638 = sbr.rel (%p636) target = $region28
        $region27: #{bert_classifier_forward.1} parent=11 // pred_region
          _
        $region28: #{bert_classifier_forward.1} parent=11 // pred_fallthru
          _
        // Predicated region
        $region29: #{bert_classifier_forward.1} parent=11 // pred_check
          %p639 = pneg %p544
        $region30: #{bert_classifier_forward.1} parent=11 // pred_check_branch
          %641 = sbr.rel (%p639) target = $region32
        $region31: #{bert_classifier_forward.1} parent=11 // pred_region
          _
        $region32: #{bert_classifier_forward.1} parent=11 // pred_fallthru
          _
        // Predicated region
        $region33: #{bert_classifier_forward.1} parent=11 // pred_check
          %p642 = pneg %p565
        $region34: #{bert_classifier_forward.1} parent=11 // pred_check_branch
          %644 = sbr.rel (%p642) target = $region36
        $region35: #{bert_classifier_forward.1} parent=11 // pred_region
          %s646 = ssub.s32 1024, 1024
          %647 = vsyncadd [#allocation7], %s646
          %s648 = sshll.u32 [#allocation8], 4
          %s649 = int_to_ptr.vmem [resolvable:$true] %s648
          %654 = dma.hbm_to_vmem [thread:$0]  %s20, 1024, %s649, [#allocation7], 64, 64, 4
        $region36: #{bert_classifier_forward.1} parent=11 // pred_fallthru
          _
        // Predicated region
        $region37: #{bert_classifier_forward.1} parent=11 // pred_check
          %p655 = pneg %p586
        $region38: #{bert_classifier_forward.1} parent=11 // pred_check_branch
          %657 = sbr.rel (%p655) target = $region40
        $region39: #{bert_classifier_forward.1} parent=11 // pred_region
          _
        $region40: #{bert_classifier_forward.1} parent=11 // pred_fallthru
          _
      $region12: #{bert_classifier_forward.1} parent=5 // pred_fallthru
        _
      %p658 = scmp.lt.s32.totalorder %s37, 4
      // Predicated region
      $region41: #{bert_classifier_forward.1} parent=5 // pred_check
        %p659 = pneg %p658
      $region42: #{bert_classifier_forward.1} parent=5 // pred_check_branch
        %661 = sbr.rel (%p659) target = $region44
      $region43: #{bert_classifier_forward.1} parent=5 // pred_region
        // Predicated region
        $region45: #{bert_classifier_forward.1} parent=43 // pred_check
          %p662 = pneg %p69
        $region46: #{bert_classifier_forward.1} parent=43 // pred_check_branch
          %664 = sbr.rel (%p662) target = $region48
        $region47: #{bert_classifier_forward.1} parent=43 // pred_region
          %p665 = scmp.lt.s32.totalorder %s44, 1
          %s666 = scalar_select %p665, %s44, 1
          %s667 = scalar_lea.vmem %s0, %s666
        $region48: #{bert_classifier_forward.1} parent=43 // pred_fallthru
          _
        // Predicated region
        $region49: #{bert_classifier_forward.1} parent=43 // pred_check
          %p668 = pneg %p95
        $region50: #{bert_classifier_forward.1} parent=43 // pred_check_branch
          %670 = sbr.rel (%p668) target = $region52
        $region51: #{bert_classifier_forward.1} parent=43 // pred_region
          %p671 = scmp.lt.s32.totalorder %s44, 1
          %s672 = scalar_select %p671, %s44, 1
          %s673 = smul.addr %s672, 8
          %s674 = scalar_lea.vmem %s1, %s673
        $region52: #{bert_classifier_forward.1} parent=43 // pred_fallthru
          _
        // Predicated region
        $region53: #{bert_classifier_forward.1} parent=43 // pred_check
          %p675 = pneg %p121
        $region54: #{bert_classifier_forward.1} parent=43 // pred_check_branch
          %677 = sbr.rel (%p675) target = $region56
        $region55: #{bert_classifier_forward.1} parent=43 // pred_region
          %p678 = scmp.lt.s32.totalorder %s44, 1
          %s679 = scalar_select %p678, %s44, 1
          %s680 = smul.addr %s679, 8
          %s681 = scalar_lea.vmem %s2, %s680
        $region56: #{bert_classifier_forward.1} parent=43 // pred_fallthru
          _
        // Predicated region
        $region57: #{bert_classifier_forward.1} parent=43 // pred_check
          %p682 = pneg %p210
        $region58: #{bert_classifier_forward.1} parent=43 // pred_check_branch
          %684 = sbr.rel (%p682) target = $region60
        $region59: #{bert_classifier_forward.1} parent=43 // pred_region
          %s685 = sand.u32 %s200, 1
          %s686 = scalar_lea.sflag [#allocation4], %s685
          %s687 = sand.u32 %s200, 1
          %s688 = smul.addr %s687, 192
          %s689 = scalar_lea.vmem [#allocation3], %s688
          %s691 = ssub.s32 3072, 3072
          %692 = vsyncadd %s686, %s691
          %s693 = smul.addr %s45, 48
          %s694 = smul.addr %s693, 64
          %s695 = scalar_lea.hbm %s6, %s694
          %s696 = sshll.u32 %s689, 4
          %s697 = int_to_ptr.vmem [resolvable:$true] %s696
          %702 = dma.hbm_to_vmem [thread:$0]  %s695, 3072, %s697, %s686, 192, 192, 12
        $region60: #{bert_classifier_forward.1} parent=43 // pred_fallthru
          _
        // Predicated region
        $region61: #{bert_classifier_forward.1} parent=43 // pred_check
          %p703 = pneg %p236
        $region62: #{bert_classifier_forward.1} parent=43 // pred_check_branch
          %705 = sbr.rel (%p703) target = $region64
        $region63: #{bert_classifier_forward.1} parent=43 // pred_region
          %p706 = scmp.lt.s32.totalorder %s45, 1
          %s707 = scalar_select %p706, %s45, 1
          %s708 = smul.addr %s707, 3
          %s709 = scalar_lea.vmem %s7, %s708
        $region64: #{bert_classifier_forward.1} parent=43 // pred_fallthru
          _
        // Predicated region
        $region65: #{bert_classifier_forward.1} parent=43 // pred_check
          %p710 = pneg %p262
        $region66: #{bert_classifier_forward.1} parent=43 // pred_check_branch
          %712 = sbr.rel (%p710) target = $region68
        $region67: #{bert_classifier_forward.1} parent=43 // pred_region
          %p713 = scmp.lt.s32.totalorder %s45, 1
          %s714 = scalar_select %p713, %s45, 1
          %s715 = smul.addr %s714, 16
          %s716 = smul.addr %s715, 4
          %s717 = scalar_lea.vmem %s8, %s716
        $region68: #{bert_classifier_forward.1} parent=43 // pred_fallthru
          _
        // Predicated region
        $region69: #{bert_classifier_forward.1} parent=43 // pred_check
          %p718 = pneg %p288
        $region70: #{bert_classifier_forward.1} parent=43 // pred_check_branch
          %720 = sbr.rel (%p718) target = $region72
        $region71: #{bert_classifier_forward.1} parent=43 // pred_region
          %p721 = scmp.lt.s32.totalorder %s45, 1
          %s722 = scalar_select %p721, %s45, 1
          %s723 = scalar_lea.vmem %s9, %s722
        $region72: #{bert_classifier_forward.1} parent=43 // pred_fallthru
          _
        // Predicated region
        $region73: #{bert_classifier_forward.1} parent=43 // pred_check
          %p724 = pneg %p314
        $region74: #{bert_classifier_forward.1} parent=43 // pred_check_branch
          %726 = sbr.rel (%p724) target = $region76
        $region75: #{bert_classifier_forward.1} parent=43 // pred_region
          %p727 = scmp.lt.s32.totalorder %s45, 1
          %s728 = scalar_select %p727, %s45, 1
          %s729 = scalar_lea.vmem %s10, %s728
        $region76: #{bert_classifier_forward.1} parent=43 // pred_fallthru
          _
        // Predicated region
        $region77: #{bert_classifier_forward.1} parent=43 // pred_check
          %p730 = pneg %p340
        $region78: #{bert_classifier_forward.1} parent=43 // pred_check_branch
          %732 = sbr.rel (%p730) target = $region80
        $region79: #{bert_classifier_forward.1} parent=43 // pred_region
          %p733 = scmp.lt.s32.totalorder %s45, 1
          %s734 = scalar_select %p733, %s45, 1
          %s735 = scalar_lea.vmem %s11, %s734
        $region80: #{bert_classifier_forward.1} parent=43 // pred_fallthru
          _
        // Predicated region
        $region81: #{bert_classifier_forward.1} parent=43 // pred_check
          %p736 = pneg %p366
        $region82: #{bert_classifier_forward.1} parent=43 // pred_check_branch
          %738 = sbr.rel (%p736) target = $region84
        $region83: #{bert_classifier_forward.1} parent=43 // pred_region
          %p739 = scmp.lt.s32.totalorder %s45, 1
          %s740 = scalar_select %p739, %s45, 1
          %s741 = smul.addr %s740, 32
          %s742 = smul.addr %s741, 4
          %s743 = scalar_lea.vmem %s12, %s742
        $region84: #{bert_classifier_forward.1} parent=43 // pred_fallthru
          _
        // Predicated region
        $region85: #{bert_classifier_forward.1} parent=43 // pred_check
          %p744 = pneg %p392
        $region86: #{bert_classifier_forward.1} parent=43 // pred_check_branch
          %746 = sbr.rel (%p744) target = $region88
        $region87: #{bert_classifier_forward.1} parent=43 // pred_region
          %p747 = scmp.lt.s32.totalorder %s45, 1
          %s748 = scalar_select %p747, %s45, 1
          %s749 = smul.addr %s748, 2
          %s750 = scalar_lea.vmem %s13, %s749
        $region88: #{bert_classifier_forward.1} parent=43 // pred_fallthru
          _
        // Predicated region
        $region89: #{bert_classifier_forward.1} parent=43 // pred_check
          %p751 = pneg %p418
        $region90: #{bert_classifier_forward.1} parent=43 // pred_check_branch
          %753 = sbr.rel (%p751) target = $region92
        $region91: #{bert_classifier_forward.1} parent=43 // pred_region
          %s754 = sand.u32 %s37, 1
          %s755 = scalar_lea.sflag [#allocation7], %s754
          %s756 = sand.u32 %s408, 1
          %s757 = smul.addr %s756, 128
          %s758 = scalar_lea.vmem [#allocation6], %s757
          %s760 = ssub.s32 2048, 2048
          %761 = vsyncadd %s755, %s760
          %s762 = smul.addr %s45, 32
          %s763 = smul.addr %s762, 64
          %s764 = scalar_lea.hbm %s14, %s763
          %s765 = sshll.u32 %s758, 4
          %s766 = int_to_ptr.vmem [resolvable:$true] %s765
          %771 = dma.hbm_to_vmem [thread:$0]  %s764, 2048, %s766, %s755, 64, 64, 4
        $region92: #{bert_classifier_forward.1} parent=43 // pred_fallthru
          _
        // Predicated region
        $region93: #{bert_classifier_forward.1} parent=43 // pred_check
          %p772 = pneg %p444
        $region94: #{bert_classifier_forward.1} parent=43 // pred_check_branch
          %774 = sbr.rel (%p772) target = $region96
        $region95: #{bert_classifier_forward.1} parent=43 // pred_region
          %p775 = scmp.lt.s32.totalorder %s45, 1
          %s776 = scalar_select %p775, %s45, 1
          %s777 = scalar_lea.vmem %s15, %s776
        $region96: #{bert_classifier_forward.1} parent=43 // pred_fallthru
          _
        // Predicated region
        $region97: #{bert_classifier_forward.1} parent=43 // pred_check
          %p778 = pneg %p470
        $region98: #{bert_classifier_forward.1} parent=43 // pred_check_branch
          %780 = sbr.rel (%p778) target = $region100
        $region99: #{bert_classifier_forward.1} parent=43 // pred_region
          %p781 = scmp.lt.s32.totalorder %s45, 1
          %s782 = scalar_select %p781, %s45, 1
          %s783 = scalar_lea.vmem %s16, %s782
        $region100: #{bert_classifier_forward.1} parent=43 // pred_fallthru
          _
        // Predicated region
        $region101: #{bert_classifier_forward.1} parent=43 // pred_check
          %p784 = pneg %p496
        $region102: #{bert_classifier_forward.1} parent=43 // pred_check_branch
          %786 = sbr.rel (%p784) target = $region104
        $region103: #{bert_classifier_forward.1} parent=43 // pred_region
          %p787 = scmp.lt.s32.totalorder %s45, 1
          %s788 = scalar_select %p787, %s45, 1
          %s789 = scalar_lea.vmem %s17, %s788
        $region104: #{bert_classifier_forward.1} parent=43 // pred_fallthru
          _
      $region44: #{bert_classifier_forward.1} parent=5 // pred_fallthru
        _
      %p790 = scmp.le.s32.totalorder 1, %s37
      %p791 = scmp.lt.s32.totalorder %s37, 5
      %p792 = pnand %p790, %p791
      %p793 = pneg %p792
      // Predicated region
      $region105: #{bert_classifier_forward.1} parent=5 // pred_check
        _
      $region106: #{bert_classifier_forward.1} parent=5 // pred_check_branch
        %795 = sbr.rel (%p792) target = $region108
      $region107: #{bert_classifier_forward.1} parent=5 // pred_region
        %s796 = ssub.s32 %s37, 1
        %s797 = sand.u32 %s203, 1
        %s798 = scalar_lea.sflag [#allocation4], %s797
        %s799 = sand.u32 %s203, 1
        %s800 = smul.addr %s799, 192
        %s801 = scalar_lea.vmem [#allocation3], %s800
        // Predicated region
        $region109: #{bert_classifier_forward.1} parent=107 // pred_check
          %p802 = pneg %p216
        $region110: #{bert_classifier_forward.1} parent=107 // pred_check_branch
          %804 = sbr.rel (%p802) target = $region112
        $region111: #{bert_classifier_forward.1} parent=107 // pred_region
          %805 = dma.done %s798, 3072
        $region112: #{bert_classifier_forward.1} parent=107 // pred_fallthru
          _
        %s806 = sand.u32 %s42, 1
        %s807 = scalar_lea.sflag [#allocation7], %s806
        %s808 = sand.u32 %s411, 1
        %s809 = smul.addr %s808, 128
        %s810 = scalar_lea.vmem [#allocation6], %s809
        // Predicated region
        $region113: #{bert_classifier_forward.1} parent=107 // pred_check
          %p811 = pneg %p424
        $region114: #{bert_classifier_forward.1} parent=107 // pred_check_branch
          %813 = sbr.rel (%p811) target = $region116
        $region115: #{bert_classifier_forward.1} parent=107 // pred_region
          %814 = dma.done %s807, 2048
        $region116: #{bert_classifier_forward.1} parent=107 // pred_fallthru
          _
        // Predicated region
        $region117: #{bert_classifier_forward.1} parent=107 // pred_check
          %p815 = pneg %p565
        $region118: #{bert_classifier_forward.1} parent=107 // pred_check_branch
          %817 = sbr.rel (%p815) target = $region120
        $region119: #{bert_classifier_forward.1} parent=107 // pred_region
          %818 = dma.done [#allocation7], 1024
        $region120: #{bert_classifier_forward.1} parent=107 // pred_fallthru
          _
        %p819 = scmp.lt.s32.totalorder %s46, 1
        %s820 = scalar_select %p819, %s46, 1
        %s821 = scalar_lea.vmem %s0, %s820
        %p822 = pneg %p75
        %p823 = pneg %p72
        %p824 = scmp.lt.s32.totalorder %s46, 1
        %s825 = scalar_select %p824, %s46, 1
        %s826 = smul.addr %s825, 8
        %s827 = scalar_lea.vmem %s1, %s826
        %p828 = pneg %p101
        %p829 = pneg %p98
        %p830 = scmp.lt.s32.totalorder %s46, 1
        %s831 = scalar_select %p830, %s46, 1
        %s832 = smul.addr %s831, 8
        %s833 = scalar_lea.vmem %s2, %s832
        %p834 = pneg %p127
        %p835 = pneg %p124
        %p836 = pneg %p148
        %p837 = pneg %p145
        %p838 = pneg %p169
        %p839 = pneg %p166
        %p840 = pneg %p190
        %p841 = pneg %p187
        %s842 = sand.u32 %s203, 1
        %s843 = scalar_lea.sflag [#allocation4], %s842
        %s844 = sand.u32 %s203, 1
        %s845 = smul.addr %s844, 192
        %s846 = scalar_lea.vmem [#allocation3], %s845
        %p847 = pneg %p216
        %p848 = pneg %p213
        %p849 = scmp.lt.s32.totalorder %s47, 1
        %s850 = scalar_select %p849, %s47, 1
        %s851 = smul.addr %s850, 3
        %s852 = scalar_lea.vmem %s7, %s851
        %p853 = pneg %p242
        %p854 = pneg %p239
        %p855 = scmp.lt.s32.totalorder %s47, 1
        %s856 = scalar_select %p855, %s47, 1
        %s857 = smul.addr %s856, 16
        %s858 = smul.addr %s857, 4
        %s859 = scalar_lea.vmem %s8, %s858
        %p860 = pneg %p268
        %p861 = pneg %p265
        %p862 = scmp.lt.s32.totalorder %s47, 1
        %s863 = scalar_select %p862, %s47, 1
        %s864 = scalar_lea.vmem %s9, %s863
        %p865 = pneg %p294
        %p866 = pneg %p291
        %p867 = scmp.lt.s32.totalorder %s47, 1
        %s868 = scalar_select %p867, %s47, 1
        %s869 = scalar_lea.vmem %s10, %s868
        %p870 = pneg %p320
        %p871 = pneg %p317
        %p872 = scmp.lt.s32.totalorder %s47, 1
        %s873 = scalar_select %p872, %s47, 1
        %s874 = scalar_lea.vmem %s11, %s873
        %p875 = pneg %p346
        %p876 = pneg %p343
        %p877 = scmp.lt.s32.totalorder %s47, 1
        %s878 = scalar_select %p877, %s47, 1
        %s879 = smul.addr %s878, 32
        %s880 = smul.addr %s879, 4
        %s881 = scalar_lea.vmem %s12, %s880
        %p882 = pneg %p372
        %p883 = pneg %p369
        %p884 = scmp.lt.s32.totalorder %s47, 1
        %s885 = scalar_select %p884, %s47, 1
        %s886 = smul.addr %s885, 2
        %s887 = scalar_lea.vmem %s13, %s886
        %p888 = pneg %p398
        %p889 = pneg %p395
        %s890 = sand.u32 %s42, 1
        %s891 = scalar_lea.sflag [#allocation7], %s890
        %s892 = sand.u32 %s411, 1
        %s893 = smul.addr %s892, 128
        %s894 = scalar_lea.vmem [#allocation6], %s893
        %p895 = pneg %p424
        %p896 = pneg %p421
        %p897 = scmp.lt.s32.totalorder %s47, 1
        %s898 = scalar_select %p897, %s47, 1
        %s899 = scalar_lea.vmem %s15, %s898
        %p900 = pneg %p450
        %p901 = pneg %p447
        %p902 = scmp.lt.s32.totalorder %s47, 1
        %s903 = scalar_select %p902, %s47, 1
        %s904 = scalar_lea.vmem %s16, %s903
        %p905 = pneg %p476
        %p906 = pneg %p473
        %p907 = scmp.lt.s32.totalorder %s47, 1
        %s908 = scalar_select %p907, %s47, 1
        %s909 = scalar_lea.vmem %s17, %s908
        %p910 = pneg %p502
        %p911 = pneg %p499
        %p912 = pneg %p523
        %p913 = pneg %p520
        %p914 = pneg %p544
        %p915 = pneg %p541
        %p916 = pneg %p565
        %p917 = pneg %p562
        %p918 = pneg %p586
        %p919 = pneg %p583
        %p920 = pneg %p612
        %p921 = pneg %p609
        %s922 = sand.u32 %s599, 1
        %s923 = scalar_lea.sflag [#allocation5], %s922
        %s924 = sand.u32 %s599, 1
        %s925 = scalar_lea.vmem [#allocation9], %s924
        %p926 = scmp.lt.s32.totalorder %s46, 1
        %s927 = scalar_select %p926, %s46, 1
        %s928 = scalar_lea.vmem %s0, %s927
        %p929 = scmp.lt.s32.totalorder %s46, 1
        %s930 = scalar_select %p929, %s46, 1
        %s931 = smul.addr %s930, 8
        %s932 = scalar_lea.vmem %s1, %s931
        %p933 = scmp.lt.s32.totalorder %s46, 1
        %s934 = scalar_select %p933, %s46, 1
        %s935 = smul.addr %s934, 8
        %s936 = scalar_lea.vmem %s2, %s935
        %p937 = scmp.lt.s32.totalorder %s47, 1
        %s938 = scalar_select %p937, %s47, 1
        %s939 = smul.addr %s938, 3
        %s940 = scalar_lea.vmem %s7, %s939
        %p941 = scmp.lt.s32.totalorder %s47, 1
        %s942 = scalar_select %p941, %s47, 1
        %s943 = smul.addr %s942, 16
        %s944 = smul.addr %s943, 4
        %s945 = scalar_lea.vmem %s8, %s944
        %p946 = scmp.lt.s32.totalorder %s47, 1
        %s947 = scalar_select %p946, %s47, 1
        %s948 = scalar_lea.vmem %s9, %s947
        %p949 = scmp.lt.s32.totalorder %s47, 1
        %s950 = scalar_select %p949, %s47, 1
        %s951 = scalar_lea.vmem %s10, %s950
        %p952 = scmp.lt.s32.totalorder %s47, 1
        %s953 = scalar_select %p952, %s47, 1
        %s954 = scalar_lea.vmem %s11, %s953
        %p955 = scmp.lt.s32.totalorder %s47, 1
        %s956 = scalar_select %p955, %s47, 1
        %s957 = smul.addr %s956, 32
        %s958 = smul.addr %s957, 4
        %s959 = scalar_lea.vmem %s12, %s958
        %p960 = scmp.lt.s32.totalorder %s47, 1
        %s961 = scalar_select %p960, %s47, 1
        %s962 = smul.addr %s961, 2
        %s963 = scalar_lea.vmem %s13, %s962
        %p964 = scmp.lt.s32.totalorder %s47, 1
        %s965 = scalar_select %p964, %s47, 1
        %s966 = scalar_lea.vmem %s15, %s965
        %p967 = scmp.lt.s32.totalorder %s47, 1
        %s968 = scalar_select %p967, %s47, 1
        %s969 = scalar_lea.vmem %s16, %s968
        %p970 = scmp.lt.s32.totalorder %s47, 1
        %s971 = scalar_select %p970, %s47, 1
        %s972 = scalar_lea.vmem %s17, %s971
        %p974 = scmp.eq.s32.totalorder %s47, 0
        // Predicated region
        $region121: #{bert_classifier_forward.1} parent=107 // pred_check
          %p975 = pneg %p974
        $region122: #{bert_classifier_forward.1} parent=107 // pred_check_branch
          %977 = sbr.rel (%p975) target = $region124
        $region123: #{bert_classifier_forward.1} parent=107 // pred_region
          %v978 = vld [vmem:[%s932] sm:$0xff]
          %v979 = vld [vmem:[%s936] sm:$0xff]
          %v980 = vadd.f32 %v978, %v979
          %v981 = vld [vmem:[%s3] sm:$0xff]
          %v982 = vadd.f32 %v980, %v981
          %v983 = vld [vmem:[%s4] sm:$0x1]
          %v984 = vld [vmem:[%s5] sm:$0x1]
          %985 = vadd.xlane.f32.xlu0 %v982
          %v986 = vpop.xlane.xlu0 %985
          %v987 = vrcp.pop 128.0
          %v988 = vmul.f32 %v986, %v987
          %v989 = vsub.f32 %v982, %v988
          %v990 = vmul.f32 %v989, %v989
          %991 = vadd.xlane.f32.xlu0 %v990
          %v992 = vpop.xlane.xlu0 %991
          %v993 = vmul.f32 %v992, %v987
          %v994 = vadd.f32 %v993, 1e-12
          %v995 = vrsqrt.pop %v994
          %v996 = vmul.f32 %v989, %v995
          %v998 = vlaneseq
          %v999 = vshrl.u32 %v998, 7
          %v1000 = vsub.s32 0, %v999
          %v1001 = vrot.slane %v983, %v1000
          %v1003 = vmul.f32 %v996, %v1001
          %v1005 = vlaneseq
          %v1006 = vshrl.u32 %v1005, 7
          %v1007 = vsub.s32 0, %v1006
          %v1008 = vrot.slane %v984, %v1007
          %v1010 = vadd.f32 %v1003, %v1008
          %1011 = vst [vmem:[#allocation2] sm:$0xff] %v1010
        $region124: #{bert_classifier_forward.1} parent=107 // pred_fallthru
          _
        %v1012 = vld [vmem:[#allocation2] sm:$0xff]
        %v1013 = vpack.c.bf16 %v1012, %v1012
        %v1014 = vld [vmem:[%s928] sm:$0x1]
        %v1015 = vld [vmem:[%s801] sm:$0xff]
        %v1016 = vld [vmem:[%s801 + $0x8] sm:$0xf]
        %v1017 = vld [vmem:[%s801 + $0xc] sm:$0xff]
        %v1018 = vld [vmem:[%s801 + $0x14] sm:$0xf]
        %v1019 = vld [vmem:[%s801 + $0x18] sm:$0xff]
        %v1020 = vld [vmem:[%s801 + $0x20] sm:$0xf]
        %v1021 = vld [vmem:[%s801 + $0x24] sm:$0xff]
        %v1022 = vld [vmem:[%s801 + $0x2c] sm:$0xf]
        %v1023 = vld [vmem:[%s801 + $0x30] sm:$0xff]
        %v1024 = vld [vmem:[%s801 + $0x38] sm:$0xf]
        %v1025 = vld [vmem:[%s801 + $0x3c] sm:$0xff]
        %v1026 = vld [vmem:[%s801 + $0x44] sm:$0xf]
        %v1027 = vld [vmem:[%s801 + $0x48] sm:$0xff]
        %v1028 = vld [vmem:[%s801 + $0x50] sm:$0xf]
        %v1029 = vld [vmem:[%s801 + $0x54] sm:$0xff]
        %v1030 = vld [vmem:[%s801 + $0x5c] sm:$0xf]
        %v1031 = vld [vmem:[%s801 + $0x60] sm:$0xff]
        %v1032 = vld [vmem:[%s801 + $0x68] sm:$0xf]
        %v1033 = vld [vmem:[%s801 + $0x6c] sm:$0xff]
        %v1034 = vld [vmem:[%s801 + $0x74] sm:$0xf]
        %v1035 = vld [vmem:[%s801 + $0x78] sm:$0xff]
        %v1036 = vld [vmem:[%s801 + $0x80] sm:$0xf]
        %v1037 = vld [vmem:[%s801 + $0x84] sm:$0xff]
        %v1038 = vld [vmem:[%s801 + $0x8c] sm:$0xf]
        %v1039 = vld [vmem:[%s801 + $0x90] sm:$0xff]
        %v1040 = vld [vmem:[%s801 + $0x98] sm:$0xf]
        %v1041 = vld [vmem:[%s801 + $0x9c] sm:$0xff]
        %v1042 = vld [vmem:[%s801 + $0xa4] sm:$0xf]
        %v1043 = vld [vmem:[%s801 + $0xa8] sm:$0xff]
        %v1044 = vld [vmem:[%s801 + $0xb0] sm:$0xf]
        %v1045 = vld [vmem:[%s801 + $0xb4] sm:$0xff]
        %v1046 = vld [vmem:[%s801 + $0xbc] sm:$0xf]
        %v1047 = vld [vmem:[%s940] sm:$0x7]
        %v1049 = vlaneseq
        %v1050 = vshrl.u32 %v1049, 7
        %v1051 = vsub.s32 0, %v1050
        %v1052 = vrot.slane %v1047, %v1051
        %v1053 = vlaneseq
        %v1054 = vshrl.u32 %v1053, 7
        %v1055 = vsub.s32 1, %v1054
        %v1056 = vrot.slane %v1047, %v1055
        %v1057 = vlaneseq
        %v1058 = vshrl.u32 %v1057, 7
        %v1059 = vsub.s32 2, %v1058
        %v1060 = vrot.slane %v1047, %v1059
        %v1096 = vunpack.c.l.b16 %v1015
        %v1097 = vunpack.c.h.b16 %v1015
        %v1098 = vunpack.c.l.b16 %v1016
        %v1099 = vunpack.c.l.b16 %v1017
        %v1100 = vunpack.c.h.b16 %v1017
        %v1101 = vunpack.c.l.b16 %v1018
        %v1102 = vunpack.c.l.b16 %v1019
        %v1103 = vunpack.c.h.b16 %v1019
        %v1104 = vunpack.c.l.b16 %v1020
        %v1105 = vunpack.c.l.b16 %v1021
        %v1106 = vunpack.c.h.b16 %v1021
        %v1107 = vunpack.c.l.b16 %v1022
        %v1108 = vunpack.c.l.b16 %v1023
        %v1109 = vunpack.c.h.b16 %v1023
        %v1110 = vunpack.c.l.b16 %v1024
        %v1111 = vunpack.c.l.b16 %v1025
        %v1112 = vunpack.c.h.b16 %v1025
        %v1113 = vunpack.c.l.b16 %v1026
        %v1114 = vunpack.c.l.b16 %v1027
        %v1115 = vunpack.c.h.b16 %v1027
        %v1116 = vunpack.c.l.b16 %v1028
        %v1117 = vunpack.c.l.b16 %v1029
        %v1118 = vunpack.c.h.b16 %v1029
        %v1119 = vunpack.c.l.b16 %v1030
        %v1120 = vunpack.c.l.b16 %v1031
        %v1121 = vunpack.c.h.b16 %v1031
        %v1122 = vunpack.c.l.b16 %v1032
        %v1123 = vunpack.c.l.b16 %v1033
        %v1124 = vunpack.c.h.b16 %v1033
        %v1125 = vunpack.c.l.b16 %v1034
        %v1126 = vunpack.c.l.b16 %v1035
        %v1127 = vunpack.c.h.b16 %v1035
        %v1128 = vunpack.c.l.b16 %v1036
        %v1129 = vunpack.c.l.b16 %v1037
        %v1130 = vunpack.c.h.b16 %v1037
        %v1131 = vunpack.c.l.b16 %v1038
        %v1132 = vunpack.c.l.b16 %v1039
        %v1133 = vunpack.c.h.b16 %v1039
        %v1134 = vunpack.c.l.b16 %v1040
        %v1135 = vunpack.c.l.b16 %v1041
        %v1136 = vunpack.c.h.b16 %v1041
        %v1137 = vunpack.c.l.b16 %v1042
        %v1138 = vunpack.c.l.b16 %v1043
        %v1139 = vunpack.c.h.b16 %v1043
        %v1140 = vunpack.c.l.b16 %v1044
        %v1141 = vunpack.c.l.b16 %v1045
        %v1142 = vunpack.c.h.b16 %v1045
        %v1143 = vunpack.c.l.b16 %v1046
        %v1144 = vpack.c.b16 %v1099, %v1096
        %v1145 = vpack.c.b16 %v1100, %v1097
        %v1146 = vpack.c.b16 %v1101, %v1098
        %v1147 = vpack.c.b16 %v1105, %v1102
        %v1148 = vpack.c.b16 %v1106, %v1103
        %v1149 = vpack.c.b16 %v1107, %v1104
        %v1150 = vpack.c.b16 %v1111, %v1108
        %v1151 = vpack.c.b16 %v1112, %v1109
        %v1152 = vpack.c.b16 %v1113, %v1110
        %v1153 = vpack.c.b16 %v1117, %v1114
        %v1154 = vpack.c.b16 %v1118, %v1115
        %v1155 = vpack.c.b16 %v1119, %v1116
        %v1156 = vpack.c.b16 %v1123, %v1120
        %v1157 = vpack.c.b16 %v1124, %v1121
        %v1158 = vpack.c.b16 %v1125, %v1122
        %v1159 = vpack.c.b16 %v1129, %v1126
        %v1160 = vpack.c.b16 %v1130, %v1127
        %v1161 = vpack.c.b16 %v1131, %v1128
        %v1162 = vpack.c.b16 %v1135, %v1132
        %v1163 = vpack.c.b16 %v1136, %v1133
        %v1164 = vpack.c.b16 %v1137, %v1134
        %v1165 = vpack.c.b16 %v1141, %v1138
        %v1166 = vpack.c.b16 %v1142, %v1139
        %v1167 = vpack.c.b16 %v1143, %v1140
        %1192 = vmatprep.subr.bf16.mxu0 %v1145
        %1193 = vmatpush1.bf16.msra.mxu0 %v1144
        %1194 = vmatprep.subr.bf16.mxu0 %v1148
        %1195 = vmatpush1.bf16.msra.mxu0 %v1147
        %1196 = vmatprep.subr.bf16.mxu0 %v1151
        %1197 = vmatpush1.bf16.msra.mxu0 %v1150
        %1198 = vmatprep.subr.bf16.mxu0 %v1154
        %1199 = vmatpush1.bf16.msra.mxu0 %v1153
        %1200 = vmatprep.subr.bf16.mxu0 %v1157
        %1201 = vmatpush1.bf16.msra.mxu0 %v1156
        %1202 = vmatprep.subr.bf16.mxu0 %v1160
        %1203 = vmatpush1.bf16.msra.mxu0 %v1159
        %1204 = vmatprep.subr.bf16.mxu0 %v1163
        %1205 = vmatpush1.bf16.msra.mxu0 %v1162
        %1206 = vmatprep.subr.bf16.mxu0 %v1166
        %1207 = vmatpush1.bf16.msra.mxu0 %v1165
        %1208 = vmatprep.subr.bf16.mxu0 0
        %1209 = vmatpush1.bf16.msra.mxu0 0
        %1210 = vmatprep.subr.bf16.mxu0 0
        %1211 = vmatpush1.bf16.msra.mxu0 0
        %1212 = vmatprep.subr.bf16.mxu0 0
        %1213 = vmatpush1.bf16.msra.mxu0 0
        %1214 = vmatprep.subr.bf16.mxu0 0
        %1215 = vmatpush1.bf16.msra.mxu0 0
        %1216 = vmatprep.subr.bf16.mxu0 0
        %1217 = vmatpush1.bf16.msra.mxu0 0
        %1218 = vmatprep.subr.bf16.mxu0 0
        %1219 = vmatpush1.bf16.msra.mxu0 0
        %1220 = vmatprep.subr.bf16.mxu0 0
        %1221 = vmatpush1.bf16.msra.mxu0 0
        %1222 = vmatprep.subr.bf16.mxu0 0
        %1223 = vmatpush1.bf16.msra.mxu0 0
        %1224 = vmatprep.mubr.bf16.mxu0 0
        %1225 = vmatmul.mubr.bf16.gmra.mrb[0].mxu0 %v1013
        %v1226 = vpop.f32.mrb[0].mxu0
        %v1227 = vadd.f32 %v1052, %v1226
        %v1228 = vpop.f32.mrb[0].mxu0
        %v1229 = vadd.f32 %v1056, %v1228
        %v1230 = vpop.f32.mrb[0].mxu0
        %v1231 = vpop.f32.mrb[0].mxu0
        %1232 = vdwg.mxu0
        %1233 = vmatprep.subr.bf16.mxu0 0
        %1234 = vmatpush1.bf16.msra.mxu0 %v1146
        %1235 = vmatprep.subr.bf16.mxu0 0
        %1236 = vmatpush1.bf16.msra.mxu0 %v1149
        %1237 = vmatprep.subr.bf16.mxu0 0
        %1238 = vmatpush1.bf16.msra.mxu0 %v1152
        %1239 = vmatprep.subr.bf16.mxu0 0
        %1240 = vmatpush1.bf16.msra.mxu0 %v1155
        %1241 = vmatprep.subr.bf16.mxu0 0
        %1242 = vmatpush1.bf16.msra.mxu0 %v1158
        %1243 = vmatprep.subr.bf16.mxu0 0
        %1244 = vmatpush1.bf16.msra.mxu0 %v1161
        %1245 = vmatprep.subr.bf16.mxu0 0
        %1246 = vmatpush1.bf16.msra.mxu0 %v1164
        %1247 = vmatprep.subr.bf16.mxu0 0
        %1248 = vmatpush1.bf16.msra.mxu0 %v1167
        %1249 = vmatprep.subr.bf16.mxu0 0
        %1250 = vmatpush1.bf16.msra.mxu0 0
        %1251 = vmatprep.subr.bf16.mxu0 0
        %1252 = vmatpush1.bf16.msra.mxu0 0
        %1253 = vmatprep.subr.bf16.mxu0 0
        %1254 = vmatpush1.bf16.msra.mxu0 0
        %1255 = vmatprep.subr.bf16.mxu0 0
        %1256 = vmatpush1.bf16.msra.mxu0 0
        %1257 = vmatprep.subr.bf16.mxu0 0
        %1258 = vmatpush1.bf16.msra.mxu0 0
        %1259 = vmatprep.subr.bf16.mxu0 0
        %1260 = vmatpush1.bf16.msra.mxu0 0
        %1261 = vmatprep.subr.bf16.mxu0 0
        %1262 = vmatpush1.bf16.msra.mxu0 0
        %1263 = vmatprep.subr.bf16.mxu0 0
        %1264 = vmatpush1.bf16.msra.mxu0 0
        %1265 = vmatprep.mubr.bf16.mxu0 0
        %1266 = vmatmul.mubr.bf16.gmra.mrb[0].mxu0 %v1013
        %v1267 = vpop.f32.mrb[0].mxu0
        %v1268 = vadd.f32 %v1060, %v1267
        %v1269 = vpop.f32.mrb[0].mxu0
        %v1270 = vpop.f32.mrb[0].mxu0
        %v1271 = vpop.f32.mrb[0].mxu0
        %1272 = vdwg.mxu0
        %v1273 = vpack.c.bf16 %v1227, %v1227
        %v1274 = vpack.c.bf16 %v1229, %v1229
        %v1276 = vlaneseq
        %v1277 = vshrl.u32 %v1276, 7
        %v1278 = vsub.s32 0, %v1277
        %v1279 = vrot.slane %v1014, %v1278
        %vm1281 = vcmask 523264
        %v1283 = vsel %vm1281, %v1273, 0
        %v1286 = vsel %vm1281, %v1274, 0
        %1288 = vmatprep.subr.bf16.mxu0 0
        %1289 = vmatpush1.bf16.xpose.msra.mxu0 %v1286
        %1290 = vmatprep.subr.bf16.mxu0 0
        %1291 = vmatpush1.bf16.xpose.msra.mxu0 0
        %1292 = vmatprep.subr.bf16.mxu0 0
        %1293 = vmatpush1.bf16.xpose.msra.mxu0 0
        %1294 = vmatprep.subr.bf16.mxu0 0
        %1295 = vmatpush1.bf16.xpose.msra.mxu0 0
        %1296 = vmatprep.subr.bf16.mxu0 0
        %1297 = vmatpush1.bf16.xpose.msra.mxu0 0
        %1298 = vmatprep.subr.bf16.mxu0 0
        %1299 = vmatpush1.bf16.xpose.msra.mxu0 0
        %1300 = vmatprep.subr.bf16.mxu0 0
        %1301 = vmatpush1.bf16.xpose.msra.mxu0 0
        %1302 = vmatprep.subr.bf16.mxu0 0
        %1303 = vmatpush1.bf16.xpose.msra.mxu0 0
        %1304 = vmatprep.subr.bf16.mxu0 0
        %1305 = vmatpush1.bf16.xpose.msra.mxu0 0
        %1306 = vmatprep.subr.bf16.mxu0 0
        %1307 = vmatpush1.bf16.xpose.msra.mxu0 0
        %1308 = vmatprep.subr.bf16.mxu0 0
        %1309 = vmatpush1.bf16.xpose.msra.mxu0 0
        %1310 = vmatprep.subr.bf16.mxu0 0
        %1311 = vmatpush1.bf16.xpose.msra.mxu0 0
        %1312 = vmatprep.subr.bf16.mxu0 0
        %1313 = vmatpush1.bf16.xpose.msra.mxu0 0
        %1314 = vmatprep.subr.bf16.mxu0 0
        %1315 = vmatpush1.bf16.xpose.msra.mxu0 0
        %1316 = vmatprep.subr.bf16.mxu0 0
        %1317 = vmatpush1.bf16.xpose.msra.mxu0 0
        %1318 = vmatprep.subr.bf16.mxu0 0
        %1319 = vmatpush1.bf16.xpose.msra.mxu0 0
        %1320 = vmatprep.mubr.bf16.mxu0 0
        %1321 = vmatmul.mubr.bf16.gmra.mrb[0].mxu0 %v1283
        %v1322 = vpop.f32.mrb[0].mxu0
        %v1323 = vadd.f32 %v1279, %v1322
        %v1324 = vpop.f32.mrb[0].mxu0
        %v1325 = vpop.f32.mrb[0].mxu0
        %v1326 = vpop.f32.mrb[0].mxu0
        %1327 = vdwg.mxu0
        %vm1328 = vcmask 64512
        %v1329 = vsel %vm1328, %v1323, -inf
        %1330 = vmax.xlane.f32.xlu0 %v1329
        %v1331 = vpop.xlane.xlu0 %1330
        %v1332 = vsub.f32 %v1323, %v1331
        %v1333 = vmul.f32 %v1332, 1.442695
        %v1334 = vpow.pop %v1333
        %v1335 = vsel %vm1328, %v1334, 0.0
        %1336 = vadd.xlane.f32.xlu0 %v1335
        %v1337 = vpop.xlane.xlu0 %1336
        %v1338 = vrcp.pop %v1337
        %v1339 = vmul.f32 %v1334, %v1338
        %v1340 = vpack.c.bf16 %v1339, %v1339
        %v1341 = vpack.c.bf16 %v1268, %v1268
        %v1343 = vsel %vm1328, %v1340, 0
        %vm1345 = vcmask 1043456
        %v1347 = vsel %vm1345, %v1341, 0
        %1349 = vmatprep.subr.bf16.mxu0 0
        %1350 = vmatpush1.bf16.msra.mxu0 %v1347
        %1351 = vmatprep.subr.bf16.mxu0 0
        %1352 = vmatpush1.bf16.msra.mxu0 0
        %1353 = vmatprep.subr.bf16.mxu0 0
        %1354 = vmatpush1.bf16.msra.mxu0 0
        %1355 = vmatprep.subr.bf16.mxu0 0
        %1356 = vmatpush1.bf16.msra.mxu0 0
        %1357 = vmatprep.subr.bf16.mxu0 0
        %1358 = vmatpush1.bf16.msra.mxu0 0
        %1359 = vmatprep.subr.bf16.mxu0 0
        %1360 = vmatpush1.bf16.msra.mxu0 0
        %1361 = vmatprep.subr.bf16.mxu0 0
        %1362 = vmatpush1.bf16.msra.mxu0 0
        %1363 = vmatprep.subr.bf16.mxu0 0
        %1364 = vmatpush1.bf16.msra.mxu0 0
        %1365 = vmatprep.subr.bf16.mxu0 0
        %1366 = vmatpush1.bf16.msra.mxu0 0
        %1367 = vmatprep.subr.bf16.mxu0 0
        %1368 = vmatpush1.bf16.msra.mxu0 0
        %1369 = vmatprep.subr.bf16.mxu0 0
        %1370 = vmatpush1.bf16.msra.mxu0 0
        %1371 = vmatprep.subr.bf16.mxu0 0
        %1372 = vmatpush1.bf16.msra.mxu0 0
        %1373 = vmatprep.subr.bf16.mxu0 0
        %1374 = vmatpush1.bf16.msra.mxu0 0
        %1375 = vmatprep.subr.bf16.mxu0 0
        %1376 = vmatpush1.bf16.msra.mxu0 0
        %1377 = vmatprep.subr.bf16.mxu0 0
        %1378 = vmatpush1.bf16.msra.mxu0 0
        %1379 = vmatprep.subr.bf16.mxu0 0
        %1380 = vmatpush1.bf16.msra.mxu0 0
        %1381 = vmatprep.mubr.bf16.mxu0 0
        %1382 = vmatmul.mubr.bf16.gmra.mrb[0].mxu0 %v1343
        %v1383 = vpop.f32.mrb[0].mxu0
        %v1384 = vadd.f32 0.0, %v1383
        %v1385 = vpop.f32.mrb[0].mxu0
        %v1386 = vpop.f32.mrb[0].mxu0
        %v1387 = vpop.f32.mrb[0].mxu0
        %1388 = vdwg.mxu0
        %1390 = vrot.lane.b32.xlu0 %v1273, 64
        %v1391 = vpop.permute.xlu0 %1390
        %1393 = vrot.lane.b32.xlu0 %v1274, 64
        %v1394 = vpop.permute.xlu0 %1393
        %v1396 = vsel %vm1281, %v1391, 0
        %v1399 = vsel %vm1281, %v1394, 0
        %1401 = vmatprep.subr.bf16.mxu0 0
        %1402 = vmatpush1.bf16.xpose.msra.mxu0 %v1399
        %1403 = vmatprep.subr.bf16.mxu0 0
        %1404 = vmatpush1.bf16.xpose.msra.mxu0 0
        %1405 = vmatprep.subr.bf16.mxu0 0
        %1406 = vmatpush1.bf16.xpose.msra.mxu0 0
        %1407 = vmatprep.subr.bf16.mxu0 0
        %1408 = vmatpush1.bf16.xpose.msra.mxu0 0
        %1409 = vmatprep.subr.bf16.mxu0 0
        %1410 = vmatpush1.bf16.xpose.msra.mxu0 0
        %1411 = vmatprep.subr.bf16.mxu0 0
        %1412 = vmatpush1.bf16.xpose.msra.mxu0 0
        %1413 = vmatprep.subr.bf16.mxu0 0
        %1414 = vmatpush1.bf16.xpose.msra.mxu0 0
        %1415 = vmatprep.subr.bf16.mxu0 0
        %1416 = vmatpush1.bf16.xpose.msra.mxu0 0
        %1417 = vmatprep.subr.bf16.mxu0 0
        %1418 = vmatpush1.bf16.xpose.msra.mxu0 0
        %1419 = vmatprep.subr.bf16.mxu0 0
        %1420 = vmatpush1.bf16.xpose.msra.mxu0 0
        %1421 = vmatprep.subr.bf16.mxu0 0
        %1422 = vmatpush1.bf16.xpose.msra.mxu0 0
        %1423 = vmatprep.subr.bf16.mxu0 0
        %1424 = vmatpush1.bf16.xpose.msra.mxu0 0
        %1425 = vmatprep.subr.bf16.mxu0 0
        %1426 = vmatpush1.bf16.xpose.msra.mxu0 0
        %1427 = vmatprep.subr.bf16.mxu0 0
        %1428 = vmatpush1.bf16.xpose.msra.mxu0 0
        %1429 = vmatprep.subr.bf16.mxu0 0
        %1430 = vmatpush1.bf16.xpose.msra.mxu0 0
        %1431 = vmatprep.subr.bf16.mxu0 0
        %1432 = vmatpush1.bf16.xpose.msra.mxu0 0
        %1433 = vmatprep.mubr.bf16.mxu0 0
        %1434 = vmatmul.mubr.bf16.gmra.mrb[0].mxu0 %v1396
        %v1435 = vpop.f32.mrb[0].mxu0
        %v1436 = vadd.f32 %v1279, %v1435
        %v1437 = vpop.f32.mrb[0].mxu0
        %v1438 = vpop.f32.mrb[0].mxu0
        %v1439 = vpop.f32.mrb[0].mxu0
        %1440 = vdwg.mxu0
        %v1441 = vsel %vm1328, %v1436, -inf
        %1442 = vmax.xlane.f32.xlu0 %v1441
        %v1443 = vpop.xlane.xlu0 %1442
        %v1444 = vsub.f32 %v1436, %v1443
        %v1445 = vmul.f32 %v1444, 1.442695
        %v1446 = vpow.pop %v1445
        %v1447 = vsel %vm1328, %v1446, 0.0
        %1448 = vadd.xlane.f32.xlu0 %v1447
        %v1449 = vpop.xlane.xlu0 %1448
        %v1450 = vrcp.pop %v1449
        %v1451 = vmul.f32 %v1446, %v1450
        %v1452 = vpack.c.bf16 %v1451, %v1451
        %1454 = vrot.lane.b32.xlu0 %v1341, 64
        %v1455 = vpop.permute.xlu0 %1454
        %v1457 = vsel %vm1328, %v1452, 0
        %v1460 = vsel %vm1345, %v1455, 0
        %1462 = vmatprep.subr.bf16.mxu0 0
        %1463 = vmatpush1.bf16.msra.mxu0 %v1460
        %1464 = vmatprep.subr.bf16.mxu0 0
        %1465 = vmatpush1.bf16.msra.mxu0 0
        %1466 = vmatprep.subr.bf16.mxu0 0
        %1467 = vmatpush1.bf16.msra.mxu0 0
        %1468 = vmatprep.subr.bf16.mxu0 0
        %1469 = vmatpush1.bf16.msra.mxu0 0
        %1470 = vmatprep.subr.bf16.mxu0 0
        %1471 = vmatpush1.bf16.msra.mxu0 0
        %1472 = vmatprep.subr.bf16.mxu0 0
        %1473 = vmatpush1.bf16.msra.mxu0 0
        %1474 = vmatprep.subr.bf16.mxu0 0
        %1475 = vmatpush1.bf16.msra.mxu0 0
        %1476 = vmatprep.subr.bf16.mxu0 0
        %1477 = vmatpush1.bf16.msra.mxu0 0
        %1478 = vmatprep.subr.bf16.mxu0 0
        %1479 = vmatpush1.bf16.msra.mxu0 0
        %1480 = vmatprep.subr.bf16.mxu0 0
        %1481 = vmatpush1.bf16.msra.mxu0 0
        %1482 = vmatprep.subr.bf16.mxu0 0
        %1483 = vmatpush1.bf16.msra.mxu0 0
        %1484 = vmatprep.subr.bf16.mxu0 0
        %1485 = vmatpush1.bf16.msra.mxu0 0
        %1486 = vmatprep.subr.bf16.mxu0 0
        %1487 = vmatpush1.bf16.msra.mxu0 0
        %1488 = vmatprep.subr.bf16.mxu0 0
        %1489 = vmatpush1.bf16.msra.mxu0 0
        %1490 = vmatprep.subr.bf16.mxu0 0
        %1491 = vmatpush1.bf16.msra.mxu0 0
        %1492 = vmatprep.subr.bf16.mxu0 0
        %1493 = vmatpush1.bf16.msra.mxu0 0
        %1494 = vmatprep.mubr.bf16.mxu0 0
        %1495 = vmatmul.mubr.bf16.gmra.mrb[0].mxu0 %v1457
        %v1496 = vpop.f32.mrb[0].mxu0
        %v1497 = vadd.f32 0.0, %v1496
        %v1498 = vpop.f32.mrb[0].mxu0
        %v1499 = vpop.f32.mrb[0].mxu0
        %v1500 = vpop.f32.mrb[0].mxu0
        %1501 = vdwg.mxu0
        %1503 = vrot.lane.b32.xlu0 %v1497, 64
        %v1504 = vpop.permute.xlu0 %1503
        %v1506 = vsel %vm1281, %v1384, %v1504
        %v1507 = vpack.c.bf16 %v1506, %v1506
        %v1508 = vld [vmem:[%s945] sm:$0xf]
        %v1509 = vld [vmem:[%s945 + $0x4] sm:$0xf]
        %v1510 = vld [vmem:[%s945 + $0x8] sm:$0xf]
        %v1511 = vld [vmem:[%s945 + $0xc] sm:$0xf]
        %v1512 = vld [vmem:[%s945 + $0x10] sm:$0xf]
        %v1513 = vld [vmem:[%s945 + $0x14] sm:$0xf]
        %v1514 = vld [vmem:[%s945 + $0x18] sm:$0xf]
        %v1515 = vld [vmem:[%s945 + $0x1c] sm:$0xf]
        %v1516 = vld [vmem:[%s945 + $0x20] sm:$0xf]
        %v1517 = vld [vmem:[%s945 + $0x24] sm:$0xf]
        %v1518 = vld [vmem:[%s945 + $0x28] sm:$0xf]
        %v1519 = vld [vmem:[%s945 + $0x2c] sm:$0xf]
        %v1520 = vld [vmem:[%s945 + $0x30] sm:$0xf]
        %v1521 = vld [vmem:[%s945 + $0x34] sm:$0xf]
        %v1522 = vld [vmem:[%s945 + $0x38] sm:$0xf]
        %v1523 = vld [vmem:[%s945 + $0x3c] sm:$0xf]
        %v1524 = vld [vmem:[%s948] sm:$0x1]
        %v1526 = vlaneseq
        %v1527 = vshrl.u32 %v1526, 7
        %v1528 = vsub.s32 0, %v1527
        %v1529 = vrot.slane %v1524, %v1528
        %v1547 = vunpack.c.l.b16 %v1508
        %v1548 = vunpack.c.l.b16 %v1509
        %v1549 = vunpack.c.l.b16 %v1510
        %v1550 = vunpack.c.l.b16 %v1511
        %v1551 = vunpack.c.l.b16 %v1512
        %v1552 = vunpack.c.l.b16 %v1513
        %v1553 = vunpack.c.l.b16 %v1514
        %v1554 = vunpack.c.l.b16 %v1515
        %v1555 = vunpack.c.l.b16 %v1516
        %v1556 = vunpack.c.l.b16 %v1517
        %v1557 = vunpack.c.l.b16 %v1518
        %v1558 = vunpack.c.l.b16 %v1519
        %v1559 = vunpack.c.l.b16 %v1520
        %v1560 = vunpack.c.l.b16 %v1521
        %v1561 = vunpack.c.l.b16 %v1522
        %v1562 = vunpack.c.l.b16 %v1523
        %v1563 = vpack.c.b16 %v1548, %v1547
        %v1564 = vpack.c.b16 %v1550, %v1549
        %v1565 = vpack.c.b16 %v1552, %v1551
        %v1566 = vpack.c.b16 %v1554, %v1553
        %v1567 = vpack.c.b16 %v1556, %v1555
        %v1568 = vpack.c.b16 %v1558, %v1557
        %v1569 = vpack.c.b16 %v1560, %v1559
        %v1570 = vpack.c.b16 %v1562, %v1561
        %1579 = vmatprep.subr.bf16.mxu0 0
        %1580 = vmatpush1.bf16.msra.mxu0 %v1563
        %1581 = vmatprep.subr.bf16.mxu0 0
        %1582 = vmatpush1.bf16.msra.mxu0 %v1564
        %1583 = vmatprep.subr.bf16.mxu0 0
        %1584 = vmatpush1.bf16.msra.mxu0 %v1565
        %1585 = vmatprep.subr.bf16.mxu0 0
        %1586 = vmatpush1.bf16.msra.mxu0 %v1566
        %1587 = vmatprep.subr.bf16.mxu0 0
        %1588 = vmatpush1.bf16.msra.mxu0 %v1567
        %1589 = vmatprep.subr.bf16.mxu0 0
        %1590 = vmatpush1.bf16.msra.mxu0 %v1568
        %1591 = vmatprep.subr.bf16.mxu0 0
        %1592 = vmatpush1.bf16.msra.mxu0 %v1569
        %1593 = vmatprep.subr.bf16.mxu0 0
        %1594 = vmatpush1.bf16.msra.mxu0 %v1570
        %1595 = vmatprep.subr.bf16.mxu0 0
        %1596 = vmatpush1.bf16.msra.mxu0 0
        %1597 = vmatprep.subr.bf16.mxu0 0
        %1598 = vmatpush1.bf16.msra.mxu0 0
        %1599 = vmatprep.subr.bf16.mxu0 0
        %1600 = vmatpush1.bf16.msra.mxu0 0
        %1601 = vmatprep.subr.bf16.mxu0 0
        %1602 = vmatpush1.bf16.msra.mxu0 0
        %1603 = vmatprep.subr.bf16.mxu0 0
        %1604 = vmatpush1.bf16.msra.mxu0 0
        %1605 = vmatprep.subr.bf16.mxu0 0
        %1606 = vmatpush1.bf16.msra.mxu0 0
        %1607 = vmatprep.subr.bf16.mxu0 0
        %1608 = vmatpush1.bf16.msra.mxu0 0
        %1609 = vmatprep.subr.bf16.mxu0 0
        %1610 = vmatpush1.bf16.msra.mxu0 0
        %1611 = vmatprep.mubr.bf16.mxu0 0
        %1612 = vmatmul.mubr.bf16.gmra.mrb[0].mxu0 %v1507
        %v1613 = vpop.f32.mrb[0].mxu0
        %v1614 = vadd.f32 %v1529, %v1613
        %v1615 = vpop.f32.mrb[0].mxu0
        %v1616 = vpop.f32.mrb[0].mxu0
        %v1617 = vpop.f32.mrb[0].mxu0
        %1618 = vdwg.mxu0
        %v1619 = vadd.f32 %v1012, %v1614
        %v1620 = vld [vmem:[%s951] sm:$0x1]
        %v1621 = vld [vmem:[%s954] sm:$0x1]
        %1622 = vadd.xlane.f32.xlu0 %v1619
        %v1623 = vpop.xlane.xlu0 %1622
        %v1624 = vrcp.pop 128.0
        %v1625 = vmul.f32 %v1623, %v1624
        %v1626 = vsub.f32 %v1619, %v1625
        %v1627 = vmul.f32 %v1626, %v1626
        %1628 = vadd.xlane.f32.xlu0 %v1627
        %v1629 = vpop.xlane.xlu0 %1628
        %v1630 = vmul.f32 %v1629, %v1624
        %v1631 = vadd.f32 %v1630, 1e-12
        %v1632 = vrsqrt.pop %v1631
        %v1633 = vmul.f32 %v1626, %v1632
        %v1635 = vlaneseq
        %v1636 = vshrl.u32 %v1635, 7
        %v1637 = vsub.s32 0, %v1636
        %v1638 = vrot.slane %v1620, %v1637
        %v1640 = vmul.f32 %v1633, %v1638
        %v1642 = vlaneseq
        %v1643 = vshrl.u32 %v1642, 7
        %v1644 = vsub.s32 0, %v1643
        %v1645 = vrot.slane %v1621, %v1644
        %v1647 = vadd.f32 %v1640, %v1645
        %v1648 = vpack.c.bf16 %v1647, %v1647
        %v1649 = vld [vmem:[%s959] sm:$0xff]
        %v1650 = vld [vmem:[%s959 + $0x8] sm:$0xff]
        %v1651 = vld [vmem:[%s959 + $0x10] sm:$0xff]
        %v1652 = vld [vmem:[%s959 + $0x18] sm:$0xff]
        %v1653 = vld [vmem:[%s959 + $0x20] sm:$0xff]
        %v1654 = vld [vmem:[%s959 + $0x28] sm:$0xff]
        %v1655 = vld [vmem:[%s959 + $0x30] sm:$0xff]
        %v1656 = vld [vmem:[%s959 + $0x38] sm:$0xff]
        %v1657 = vld [vmem:[%s959 + $0x40] sm:$0xff]
        %v1658 = vld [vmem:[%s959 + $0x48] sm:$0xff]
        %v1659 = vld [vmem:[%s959 + $0x50] sm:$0xff]
        %v1660 = vld [vmem:[%s959 + $0x58] sm:$0xff]
        %v1661 = vld [vmem:[%s959 + $0x60] sm:$0xff]
        %v1662 = vld [vmem:[%s959 + $0x68] sm:$0xff]
        %v1663 = vld [vmem:[%s959 + $0x70] sm:$0xff]
        %v1664 = vld [vmem:[%s959 + $0x78] sm:$0xff]
        %v1665 = vld [vmem:[%s963] sm:$0x3]
        %v1667 = vlaneseq
        %v1668 = vshrl.u32 %v1667, 7
        %v1669 = vsub.s32 0, %v1668
        %v1670 = vrot.slane %v1665, %v1669
        %v1671 = vlaneseq
        %v1672 = vshrl.u32 %v1671, 7
        %v1673 = vsub.s32 1, %v1672
        %v1674 = vrot.slane %v1665, %v1673
        %v1693 = vunpack.c.l.b16 %v1649
        %v1694 = vunpack.c.h.b16 %v1649
        %v1695 = vunpack.c.l.b16 %v1650
        %v1696 = vunpack.c.h.b16 %v1650
        %v1697 = vunpack.c.l.b16 %v1651
        %v1698 = vunpack.c.h.b16 %v1651
        %v1699 = vunpack.c.l.b16 %v1652
        %v1700 = vunpack.c.h.b16 %v1652
        %v1701 = vunpack.c.l.b16 %v1653
        %v1702 = vunpack.c.h.b16 %v1653
        %v1703 = vunpack.c.l.b16 %v1654
        %v1704 = vunpack.c.h.b16 %v1654
        %v1705 = vunpack.c.l.b16 %v1655
        %v1706 = vunpack.c.h.b16 %v1655
        %v1707 = vunpack.c.l.b16 %v1656
        %v1708 = vunpack.c.h.b16 %v1656
        %v1709 = vunpack.c.l.b16 %v1657
        %v1710 = vunpack.c.h.b16 %v1657
        %v1711 = vunpack.c.l.b16 %v1658
        %v1712 = vunpack.c.h.b16 %v1658
        %v1713 = vunpack.c.l.b16 %v1659
        %v1714 = vunpack.c.h.b16 %v1659
        %v1715 = vunpack.c.l.b16 %v1660
        %v1716 = vunpack.c.h.b16 %v1660
        %v1717 = vunpack.c.l.b16 %v1661
        %v1718 = vunpack.c.h.b16 %v1661
        %v1719 = vunpack.c.l.b16 %v1662
        %v1720 = vunpack.c.h.b16 %v1662
        %v1721 = vunpack.c.l.b16 %v1663
        %v1722 = vunpack.c.h.b16 %v1663
        %v1723 = vunpack.c.l.b16 %v1664
        %v1724 = vunpack.c.h.b16 %v1664
        %v1725 = vpack.c.b16 %v1695, %v1693
        %v1726 = vpack.c.b16 %v1696, %v1694
        %v1727 = vpack.c.b16 %v1699, %v1697
        %v1728 = vpack.c.b16 %v1700, %v1698
        %v1729 = vpack.c.b16 %v1703, %v1701
        %v1730 = vpack.c.b16 %v1704, %v1702
        %v1731 = vpack.c.b16 %v1707, %v1705
        %v1732 = vpack.c.b16 %v1708, %v1706
        %v1733 = vpack.c.b16 %v1711, %v1709
        %v1734 = vpack.c.b16 %v1712, %v1710
        %v1735 = vpack.c.b16 %v1715, %v1713
        %v1736 = vpack.c.b16 %v1716, %v1714
        %v1737 = vpack.c.b16 %v1719, %v1717
        %v1738 = vpack.c.b16 %v1720, %v1718
        %v1739 = vpack.c.b16 %v1723, %v1721
        %v1740 = vpack.c.b16 %v1724, %v1722
        %1757 = vmatprep.subr.bf16.mxu0 %v1726
        %1758 = vmatpush1.bf16.msra.mxu0 %v1725
        %1759 = vmatprep.subr.bf16.mxu0 %v1728
        %1760 = vmatpush1.bf16.msra.mxu0 %v1727
        %1761 = vmatprep.subr.bf16.mxu0 %v1730
        %1762 = vmatpush1.bf16.msra.mxu0 %v1729
        %1763 = vmatprep.subr.bf16.mxu0 %v1732
        %1764 = vmatpush1.bf16.msra.mxu0 %v1731
        %1765 = vmatprep.subr.bf16.mxu0 %v1734
        %1766 = vmatpush1.bf16.msra.mxu0 %v1733
        %1767 = vmatprep.subr.bf16.mxu0 %v1736
        %1768 = vmatpush1.bf16.msra.mxu0 %v1735
        %1769 = vmatprep.subr.bf16.mxu0 %v1738
        %1770 = vmatpush1.bf16.msra.mxu0 %v1737
        %1771 = vmatprep.subr.bf16.mxu0 %v1740
        %1772 = vmatpush1.bf16.msra.mxu0 %v1739
        %1773 = vmatprep.subr.bf16.mxu0 0
        %1774 = vmatpush1.bf16.msra.mxu0 0
        %1775 = vmatprep.subr.bf16.mxu0 0
        %1776 = vmatpush1.bf16.msra.mxu0 0
        %1777 = vmatprep.subr.bf16.mxu0 0
        %1778 = vmatpush1.bf16.msra.mxu0 0
        %1779 = vmatprep.subr.bf16.mxu0 0
        %1780 = vmatpush1.bf16.msra.mxu0 0
        %1781 = vmatprep.subr.bf16.mxu0 0
        %1782 = vmatpush1.bf16.msra.mxu0 0
        %1783 = vmatprep.subr.bf16.mxu0 0
        %1784 = vmatpush1.bf16.msra.mxu0 0
        %1785 = vmatprep.subr.bf16.mxu0 0
        %1786 = vmatpush1.bf16.msra.mxu0 0
        %1787 = vmatprep.subr.bf16.mxu0 0
        %1788 = vmatpush1.bf16.msra.mxu0 0
        %1789 = vmatprep.mubr.bf16.mxu0 0
        %1790 = vmatmul.mubr.bf16.gmra.mrb[0].mxu0 %v1648
        %v1791 = vpop.f32.mrb[0].mxu0
        %v1792 = vadd.f32 %v1670, %v1791
        %v1793 = vpop.f32.mrb[0].mxu0
        %v1794 = vadd.f32 %v1674, %v1793
        %v1795 = vpop.f32.mrb[0].mxu0
        %v1796 = vpop.f32.mrb[0].mxu0
        %1797 = vdwg.mxu0
        %v1798 = vmul.f32 %v1792, 0.5
        %v1799 = vmul.f32 %v1794, 0.5
        %v1800 = vmul.f32 %v1792, 0.044715
        %v1801 = vmul.f32 %v1794, 0.044715
        %v1802 = vmul.f32 %v1800, %v1792
        %v1803 = vmul.f32 %v1801, %v1794
        %v1804 = vmul.f32 %v1802, %v1792
        %v1805 = vmul.f32 %v1803, %v1794
        %v1806 = vadd.f32 %v1792, %v1804
        %v1807 = vadd.f32 %v1794, %v1805
        %v1808 = vmul.f32 %v1806, 0.7978846
        %v1809 = vmul.f32 %v1807, 0.7978846
        %v1810 = vtanh.pop %v1808
        %v1811 = vtanh.pop %v1809
        %v1812 = vadd.f32 %v1810, 1.0
        %v1813 = vadd.f32 %v1811, 1.0
        %v1814 = vmul.f32 %v1798, %v1812
        %v1815 = vmul.f32 %v1799, %v1813
        %v1816 = vpack.c.bf16 %v1814, %v1814
        %v1817 = vpack.c.bf16 %v1815, %v1815
        %v1818 = vld [vmem:[%s810] sm:$0xf]
        %v1819 = vld [vmem:[%s810 + $0x4] sm:$0xf]
        %v1820 = vld [vmem:[%s810 + $0x8] sm:$0xf]
        %v1821 = vld [vmem:[%s810 + $0xc] sm:$0xf]
        %v1822 = vld [vmem:[%s810 + $0x10] sm:$0xf]
        %v1823 = vld [vmem:[%s810 + $0x14] sm:$0xf]
        %v1824 = vld [vmem:[%s810 + $0x18] sm:$0xf]
        %v1825 = vld [vmem:[%s810 + $0x1c] sm:$0xf]
        %v1826 = vld [vmem:[%s810 + $0x20] sm:$0xf]
        %v1827 = vld [vmem:[%s810 + $0x24] sm:$0xf]
        %v1828 = vld [vmem:[%s810 + $0x28] sm:$0xf]
        %v1829 = vld [vmem:[%s810 + $0x2c] sm:$0xf]
        %v1830 = vld [vmem:[%s810 + $0x30] sm:$0xf]
        %v1831 = vld [vmem:[%s810 + $0x34] sm:$0xf]
        %v1832 = vld [vmem:[%s810 + $0x38] sm:$0xf]
        %v1833 = vld [vmem:[%s810 + $0x3c] sm:$0xf]
        %v1834 = vld [vmem:[%s810 + $0x40] sm:$0xf]
        %v1835 = vld [vmem:[%s810 + $0x44] sm:$0xf]
        %v1836 = vld [vmem:[%s810 + $0x48] sm:$0xf]
        %v1837 = vld [vmem:[%s810 + $0x4c] sm:$0xf]
        %v1838 = vld [vmem:[%s810 + $0x50] sm:$0xf]
        %v1839 = vld [vmem:[%s810 + $0x54] sm:$0xf]
        %v1840 = vld [vmem:[%s810 + $0x58] sm:$0xf]
        %v1841 = vld [vmem:[%s810 + $0x5c] sm:$0xf]
        %v1842 = vld [vmem:[%s810 + $0x60] sm:$0xf]
        %v1843 = vld [vmem:[%s810 + $0x64] sm:$0xf]
        %v1844 = vld [vmem:[%s810 + $0x68] sm:$0xf]
        %v1845 = vld [vmem:[%s810 + $0x6c] sm:$0xf]
        %v1846 = vld [vmem:[%s810 + $0x70] sm:$0xf]
        %v1847 = vld [vmem:[%s810 + $0x74] sm:$0xf]
        %v1848 = vld [vmem:[%s810 + $0x78] sm:$0xf]
        %v1849 = vld [vmem:[%s810 + $0x7c] sm:$0xf]
        %v1850 = vld [vmem:[%s966] sm:$0x1]
        %v1852 = vlaneseq
        %v1853 = vshrl.u32 %v1852, 7
        %v1854 = vsub.s32 0, %v1853
        %v1855 = vrot.slane %v1850, %v1854
        %v1889 = vunpack.c.l.b16 %v1818
        %v1890 = vunpack.c.l.b16 %v1819
        %v1891 = vunpack.c.l.b16 %v1820
        %v1892 = vunpack.c.l.b16 %v1821
        %v1893 = vunpack.c.l.b16 %v1822
        %v1894 = vunpack.c.l.b16 %v1823
        %v1895 = vunpack.c.l.b16 %v1824
        %v1896 = vunpack.c.l.b16 %v1825
        %v1897 = vunpack.c.l.b16 %v1826
        %v1898 = vunpack.c.l.b16 %v1827
        %v1899 = vunpack.c.l.b16 %v1828
        %v1900 = vunpack.c.l.b16 %v1829
        %v1901 = vunpack.c.l.b16 %v1830
        %v1902 = vunpack.c.l.b16 %v1831
        %v1903 = vunpack.c.l.b16 %v1832
        %v1904 = vunpack.c.l.b16 %v1833
        %v1905 = vunpack.c.l.b16 %v1834
        %v1906 = vunpack.c.l.b16 %v1835
        %v1907 = vunpack.c.l.b16 %v1836
        %v1908 = vunpack.c.l.b16 %v1837
        %v1909 = vunpack.c.l.b16 %v1838
        %v1910 = vunpack.c.l.b16 %v1839
        %v1911 = vunpack.c.l.b16 %v1840
        %v1912 = vunpack.c.l.b16 %v1841
        %v1913 = vunpack.c.l.b16 %v1842
        %v1914 = vunpack.c.l.b16 %v1843
        %v1915 = vunpack.c.l.b16 %v1844
        %v1916 = vunpack.c.l.b16 %v1845
        %v1917 = vunpack.c.l.b16 %v1846
        %v1918 = vunpack.c.l.b16 %v1847
        %v1919 = vunpack.c.l.b16 %v1848
        %v1920 = vunpack.c.l.b16 %v1849
        %v1921 = vpack.c.b16 %v1890, %v1889
        %v1922 = vpack.c.b16 %v1892, %v1891
        %v1923 = vpack.c.b16 %v1894, %v1893
        %v1924 = vpack.c.b16 %v1896, %v1895
        %v1925 = vpack.c.b16 %v1898, %v1897
        %v1926 = vpack.c.b16 %v1900, %v1899
        %v1927 = vpack.c.b16 %v1902, %v1901
        %v1928 = vpack.c.b16 %v1904, %v1903
        %v1929 = vpack.c.b16 %v1906, %v1905
        %v1930 = vpack.c.b16 %v1908, %v1907
        %v1931 = vpack.c.b16 %v1910, %v1909
        %v1932 = vpack.c.b16 %v1912, %v1911
        %v1933 = vpack.c.b16 %v1914, %v1913
        %v1934 = vpack.c.b16 %v1916, %v1915
        %v1935 = vpack.c.b16 %v1918, %v1917
        %v1936 = vpack.c.b16 %v1920, %v1919
        %1953 = vmatprep.subr.bf16.mxu0 0
        %1954 = vmatpush1.bf16.msra.mxu0 %v1921
        %1955 = vmatprep.subr.bf16.mxu0 0
        %1956 = vmatpush1.bf16.msra.mxu0 %v1922
        %1957 = vmatprep.subr.bf16.mxu0 0
        %1958 = vmatpush1.bf16.msra.mxu0 %v1923
        %1959 = vmatprep.subr.bf16.mxu0 0
        %1960 = vmatpush1.bf16.msra.mxu0 %v1924
        %1961 = vmatprep.subr.bf16.mxu0 0
        %1962 = vmatpush1.bf16.msra.mxu0 %v1925
        %1963 = vmatprep.subr.bf16.mxu0 0
        %1964 = vmatpush1.bf16.msra.mxu0 %v1926
        %1965 = vmatprep.subr.bf16.mxu0 0
        %1966 = vmatpush1.bf16.msra.mxu0 %v1927
        %1967 = vmatprep.subr.bf16.mxu0 0
        %1968 = vmatpush1.bf16.msra.mxu0 %v1928
        %1969 = vmatprep.subr.bf16.mxu0 0
        %1970 = vmatpush1.bf16.msra.mxu0 %v1929
        %1971 = vmatprep.subr.bf16.mxu0 0
        %1972 = vmatpush1.bf16.msra.mxu0 %v1930
        %1973 = vmatprep.subr.bf16.mxu0 0
        %1974 = vmatpush1.bf16.msra.mxu0 %v1931
        %1975 = vmatprep.subr.bf16.mxu0 0
        %1976 = vmatpush1.bf16.msra.mxu0 %v1932
        %1977 = vmatprep.subr.bf16.mxu0 0
        %1978 = vmatpush1.bf16.msra.mxu0 %v1933
        %1979 = vmatprep.subr.bf16.mxu0 0
        %1980 = vmatpush1.bf16.msra.mxu0 %v1934
        %1981 = vmatprep.subr.bf16.mxu0 0
        %1982 = vmatpush1.bf16.msra.mxu0 %v1935
        %1983 = vmatprep.subr.bf16.mxu0 0
        %1984 = vmatpush1.bf16.msra.mxu0 %v1936
        %1985 = vmatprep.mubr.bf16.mxu0 %v1817
        %1986 = vmatmul.mubr.bf16.gmra.mrb[0].mxu0 %v1816
        %v1987 = vpop.f32.mrb[0].mxu0
        %v1988 = vadd.f32 %v1855, %v1987
        %v1989 = vpop.f32.mrb[0].mxu0
        %v1990 = vpop.f32.mrb[0].mxu0
        %v1991 = vpop.f32.mrb[0].mxu0
        %1992 = vdwg.mxu0
        %v1993 = vadd.f32 %v1647, %v1988
        %v1994 = vld [vmem:[%s969] sm:$0x1]
        %v1995 = vld [vmem:[%s972] sm:$0x1]
        %1996 = vadd.xlane.f32.xlu0 %v1993
        %v1997 = vpop.xlane.xlu0 %1996
        %v1998 = vmul.f32 %v1997, %v1624
        %v1999 = vsub.f32 %v1993, %v1998
        %v2000 = vmul.f32 %v1999, %v1999
        %2001 = vadd.xlane.f32.xlu0 %v2000
        %v2002 = vpop.xlane.xlu0 %2001
        %v2003 = vmul.f32 %v2002, %v1624
        %v2004 = vadd.f32 %v2003, 1e-12
        %v2005 = vrsqrt.pop %v2004
        %v2006 = vmul.f32 %v1999, %v2005
        %v2008 = vlaneseq
        %v2009 = vshrl.u32 %v2008, 7
        %v2010 = vsub.s32 0, %v2009
        %v2011 = vrot.slane %v1994, %v2010
        %v2013 = vmul.f32 %v2006, %v2011
        %v2015 = vlaneseq
        %v2016 = vshrl.u32 %v2015, 7
        %v2017 = vsub.s32 0, %v2016
        %v2018 = vrot.slane %v1995, %v2017
        %v2020 = vadd.f32 %v2013, %v2018
        %2021 = vst [vmem:[#allocation2] sm:$0xff] %v2020
        %p2022 = scmp.eq.s32.totalorder %s47, 1
        // Predicated region
        $region125: #{bert_classifier_forward.1} parent=107 // pred_check
          %p2023 = pneg %p2022
        $region126: #{bert_classifier_forward.1} parent=107 // pred_check_branch
          %2025 = sbr.rel (%p2023) target = $region128
        $region127: #{bert_classifier_forward.1} parent=107 // pred_region
          %v2026 = vpack.c.bf16 %v2020, %v2020
          %v2027 = vld [vmem:[%s18] sm:$0xf]
          %v2028 = vld [vmem:[%s18 + $0x4] sm:$0xf]
          %v2029 = vld [vmem:[%s18 + $0x8] sm:$0xf]
          %v2030 = vld [vmem:[%s18 + $0xc] sm:$0xf]
          %v2031 = vld [vmem:[%s18 + $0x10] sm:$0xf]
          %v2032 = vld [vmem:[%s18 + $0x14] sm:$0xf]
          %v2033 = vld [vmem:[%s18 + $0x18] sm:$0xf]
          %v2034 = vld [vmem:[%s18 + $0x1c] sm:$0xf]
          %v2035 = vld [vmem:[%s18 + $0x20] sm:$0xf]
          %v2036 = vld [vmem:[%s18 + $0x24] sm:$0xf]
          %v2037 = vld [vmem:[%s18 + $0x28] sm:$0xf]
          %v2038 = vld [vmem:[%s18 + $0x2c] sm:$0xf]
          %v2039 = vld [vmem:[%s18 + $0x30] sm:$0xf]
          %v2040 = vld [vmem:[%s18 + $0x34] sm:$0xf]
          %v2041 = vld [vmem:[%s18 + $0x38] sm:$0xf]
          %v2042 = vld [vmem:[%s18 + $0x3c] sm:$0xf]
          %v2043 = vld [vmem:[%s19] sm:$0x1]
          %v2060 = vunpack.c.l.b16 %v2027
          %v2061 = vunpack.c.l.b16 %v2028
          %v2062 = vunpack.c.l.b16 %v2029
          %v2063 = vunpack.c.l.b16 %v2030
          %v2064 = vunpack.c.l.b16 %v2031
          %v2065 = vunpack.c.l.b16 %v2032
          %v2066 = vunpack.c.l.b16 %v2033
          %v2067 = vunpack.c.l.b16 %v2034
          %v2068 = vunpack.c.l.b16 %v2035
          %v2069 = vunpack.c.l.b16 %v2036
          %v2070 = vunpack.c.l.b16 %v2037
          %v2071 = vunpack.c.l.b16 %v2038
          %v2072 = vunpack.c.l.b16 %v2039
          %v2073 = vunpack.c.l.b16 %v2040
          %v2074 = vunpack.c.l.b16 %v2041
          %v2075 = vunpack.c.l.b16 %v2042
          %v2076 = vpack.c.b16 %v2061, %v2060
          %v2077 = vpack.c.b16 %v2063, %v2062
          %v2078 = vpack.c.b16 %v2065, %v2064
          %v2079 = vpack.c.b16 %v2067, %v2066
          %v2080 = vpack.c.b16 %v2069, %v2068
          %v2081 = vpack.c.b16 %v2071, %v2070
          %v2082 = vpack.c.b16 %v2073, %v2072
          %v2083 = vpack.c.b16 %v2075, %v2074
          %2092 = vmatprep.subr.bf16.mxu0 0
          %2093 = vmatpush1.bf16.msra.mxu0 %v2076
          %2094 = vmatprep.subr.bf16.mxu0 0
          %2095 = vmatpush1.bf16.msra.mxu0 %v2077
          %2096 = vmatprep.subr.bf16.mxu0 0
          %2097 = vmatpush1.bf16.msra.mxu0 %v2078
          %2098 = vmatprep.subr.bf16.mxu0 0
          %2099 = vmatpush1.bf16.msra.mxu0 %v2079
          %2100 = vmatprep.subr.bf16.mxu0 0
          %2101 = vmatpush1.bf16.msra.mxu0 %v2080
          %2102 = vmatprep.subr.bf16.mxu0 0
          %2103 = vmatpush1.bf16.msra.mxu0 %v2081
          %2104 = vmatprep.subr.bf16.mxu0 0
          %2105 = vmatpush1.bf16.msra.mxu0 %v2082
          %2106 = vmatprep.subr.bf16.mxu0 0
          %2107 = vmatpush1.bf16.msra.mxu0 %v2083
          %2108 = vmatprep.subr.bf16.mxu0 0
          %2109 = vmatpush1.bf16.msra.mxu0 0
          %2110 = vmatprep.subr.bf16.mxu0 0
          %2111 = vmatpush1.bf16.msra.mxu0 0
          %2112 = vmatprep.subr.bf16.mxu0 0
          %2113 = vmatpush1.bf16.msra.mxu0 0
          %2114 = vmatprep.subr.bf16.mxu0 0
          %2115 = vmatpush1.bf16.msra.mxu0 0
          %2116 = vmatprep.subr.bf16.mxu0 0
          %2117 = vmatpush1.bf16.msra.mxu0 0
          %2118 = vmatprep.subr.bf16.mxu0 0
          %2119 = vmatpush1.bf16.msra.mxu0 0
          %2120 = vmatprep.subr.bf16.mxu0 0
          %2121 = vmatpush1.bf16.msra.mxu0 0
          %2122 = vmatprep.subr.bf16.mxu0 0
          %2123 = vmatpush1.bf16.msra.mxu0 0
          %2124 = vmatprep.mubr.bf16.mxu0 0
          %2125 = vmatmul.mubr.bf16.gmra.mrb[0].mxu0 %v2026
          %v2126 = vpop.f32.mrb[0].mxu0
          %v2127 = vadd.f32 %v2043, %v2126
          %v2128 = vpop.f32.mrb[0].mxu0
          %v2129 = vpop.f32.mrb[0].mxu0
          %v2130 = vpop.f32.mrb[0].mxu0
          %2131 = vdwg.mxu0
          %v2132 = vtanh.pop %v2127
          %v2133 = vpack.c.bf16 %v2132, %v2132
          %v2134 = vld [vmem:[#allocation8] sm:$0xf]
          %v2135 = vld [vmem:[#allocation8 + $0x4] sm:$0xf]
          %v2136 = vld [vmem:[#allocation8 + $0x8] sm:$0xf]
          %v2137 = vld [vmem:[#allocation8 + $0xc] sm:$0xf]
          %v2138 = vld [vmem:[#allocation8 + $0x10] sm:$0xf]
          %v2139 = vld [vmem:[#allocation8 + $0x14] sm:$0xf]
          %v2140 = vld [vmem:[#allocation8 + $0x18] sm:$0xf]
          %v2141 = vld [vmem:[#allocation8 + $0x1c] sm:$0xf]
          %v2142 = vld [vmem:[#allocation8 + $0x20] sm:$0xf]
          %v2143 = vld [vmem:[#allocation8 + $0x24] sm:$0xf]
          %v2144 = vld [vmem:[#allocation8 + $0x28] sm:$0xf]
          %v2145 = vld [vmem:[#allocation8 + $0x2c] sm:$0xf]
          %v2146 = vld [vmem:[#allocation8 + $0x30] sm:$0xf]
          %v2147 = vld [vmem:[#allocation8 + $0x34] sm:$0xf]
          %v2148 = vld [vmem:[#allocation8 + $0x38] sm:$0xf]
          %v2149 = vld [vmem:[#allocation8 + $0x3c] sm:$0xf]
          %v2150 = vld [vmem:[%s21] sm:$0x1]
          %v2167 = vunpack.c.l.b16 %v2134
          %v2168 = vunpack.c.l.b16 %v2135
          %v2169 = vunpack.c.l.b16 %v2136
          %v2170 = vunpack.c.l.b16 %v2137
          %v2171 = vunpack.c.l.b16 %v2138
          %v2172 = vunpack.c.l.b16 %v2139
          %v2173 = vunpack.c.l.b16 %v2140
          %v2174 = vunpack.c.l.b16 %v2141
          %v2175 = vunpack.c.l.b16 %v2142
          %v2176 = vunpack.c.l.b16 %v2143
          %v2177 = vunpack.c.l.b16 %v2144
          %v2178 = vunpack.c.l.b16 %v2145
          %v2179 = vunpack.c.l.b16 %v2146
          %v2180 = vunpack.c.l.b16 %v2147
          %v2181 = vunpack.c.l.b16 %v2148
          %v2182 = vunpack.c.l.b16 %v2149
          %v2183 = vpack.c.b16 %v2168, %v2167
          %v2184 = vpack.c.b16 %v2170, %v2169
          %v2185 = vpack.c.b16 %v2172, %v2171
          %v2186 = vpack.c.b16 %v2174, %v2173
          %v2187 = vpack.c.b16 %v2176, %v2175
          %v2188 = vpack.c.b16 %v2178, %v2177
          %v2189 = vpack.c.b16 %v2180, %v2179
          %v2190 = vpack.c.b16 %v2182, %v2181
          %2199 = vmatprep.subr.bf16.mxu0 0
          %2200 = vmatpush1.bf16.msra.mxu0 %v2183
          %2201 = vmatprep.subr.bf16.mxu0 0
          %2202 = vmatpush1.bf16.msra.mxu0 %v2184
          %2203 = vmatprep.subr.bf16.mxu0 0
          %2204 = vmatpush1.bf16.msra.mxu0 %v2185
          %2205 = vmatprep.subr.bf16.mxu0 0
          %2206 = vmatpush1.bf16.msra.mxu0 %v2186
          %2207 = vmatprep.subr.bf16.mxu0 0
          %2208 = vmatpush1.bf16.msra.mxu0 %v2187
          %2209 = vmatprep.subr.bf16.mxu0 0
          %2210 = vmatpush1.bf16.msra.mxu0 %v2188
          %2211 = vmatprep.subr.bf16.mxu0 0
          %2212 = vmatpush1.bf16.msra.mxu0 %v2189
          %2213 = vmatprep.subr.bf16.mxu0 0
          %2214 = vmatpush1.bf16.msra.mxu0 %v2190
          %2215 = vmatprep.subr.bf16.mxu0 0
          %2216 = vmatpush1.bf16.msra.mxu0 0
          %2217 = vmatprep.subr.bf16.mxu0 0
          %2218 = vmatpush1.bf16.msra.mxu0 0
          %2219 = vmatprep.subr.bf16.mxu0 0
          %2220 = vmatpush1.bf16.msra.mxu0 0
          %2221 = vmatprep.subr.bf16.mxu0 0
          %2222 = vmatpush1.bf16.msra.mxu0 0
          %2223 = vmatprep.subr.bf16.mxu0 0
          %2224 = vmatpush1.bf16.msra.mxu0 0
          %2225 = vmatprep.subr.bf16.mxu0 0
          %2226 = vmatpush1.bf16.msra.mxu0 0
          %2227 = vmatprep.subr.bf16.mxu0 0
          %2228 = vmatpush1.bf16.msra.mxu0 0
          %2229 = vmatprep.subr.bf16.mxu0 0
          %2230 = vmatpush1.bf16.msra.mxu0 0
          %2231 = vmatprep.mubr.bf16.mxu0 0
          %2232 = vmatmul.mubr.bf16.gmra.mrb[0].mxu0 %v2133
          %v2233 = vpop.f32.mrb[0].mxu0
          %v2234 = vadd.f32 %v2150, %v2233
          %v2235 = vpop.f32.mrb[0].mxu0
          %v2236 = vpop.f32.mrb[0].mxu0
          %v2237 = vpop.f32.mrb[0].mxu0
          %2238 = vdwg.mxu0
          %2239 = vst [vmem:[%s925] sm:$0x1] %v2234
        $region128: #{bert_classifier_forward.1} parent=107 // pred_fallthru
          _
        %s2240 = sand.u32 %s599, 1
        %s2241 = scalar_lea.sflag [#allocation5], %s2240
        %s2242 = sand.u32 %s599, 1
        %s2243 = scalar_lea.vmem [#allocation9], %s2242
        // Predicated region
        $region129: #{bert_classifier_forward.1} parent=107 // pred_check
          %p2244 = pneg %p609
        $region130: #{bert_classifier_forward.1} parent=107 // pred_check_branch
          %2246 = sbr.rel (%p2244) target = $region132
        $region131: #{bert_classifier_forward.1} parent=107 // pred_region
          %s2248 = ssub.s32 16, 16
          %2249 = vsyncadd %s2241, %s2248
          %s2250 = smul.addr %s46, 16
          %s2251 = scalar_lea.hbm %s22, %s2250
          %s2253 = sshll.u32 %s2243, 4
          %s2254 = int_to_ptr.vmem [resolvable:$true] %s2253
          %2256 = dma.vmem_to_hbm [thread:$0]  %s2254, 16, %s2251, %s2241
        $region132: #{bert_classifier_forward.1} parent=107 // pred_fallthru
          _
      $region108: #{bert_classifier_forward.1} parent=5 // pred_fallthru
        _
      %p2257 = scmp.le.s32.totalorder 2, %s37
      // Predicated region
      $region133: #{bert_classifier_forward.1} parent=5 // pred_check
        %p2258 = pneg %p2257
      $region134: #{bert_classifier_forward.1} parent=5 // pred_check_branch
        %2260 = sbr.rel (%p2258) target = $region136
      $region135: #{bert_classifier_forward.1} parent=5 // pred_region
        %s2261 = ssub.s32 %s37, 2
        // Predicated region
        $region137: #{bert_classifier_forward.1} parent=135 // pred_check
          %p2262 = pneg %p615
        $region138: #{bert_classifier_forward.1} parent=135 // pred_check_branch
          %2264 = sbr.rel (%p2262) target = $region140
        $region139: #{bert_classifier_forward.1} parent=135 // pred_region
          %s2265 = sand.u32 %s600, 1
          %s2266 = scalar_lea.sflag [#allocation5], %s2265
          %s2267 = sand.u32 %s600, 1
          %s2268 = scalar_lea.vmem [#allocation9], %s2267
          %2269 = dma.done %s2266, 16
        $region140: #{bert_classifier_forward.1} parent=135 // pred_fallthru
          _
      $region136: #{bert_classifier_forward.1} parent=5 // pred_fallthru
        _
    $region6: #{bert_classifier_forward.1} parent=1 // loop_footer
      %s41 = sadd.s32 1, %s37
    $region7: #{bert_classifier_forward.1} parent=1 // loop_footer_branch
      %36 = sbr.rel target = $region3
    $region8: #{bert_classifier_forward.1} parent=1 // loop_exit
      _
    %2270 = vsyncpa [#allocation4], 1
    %s2271 = scalar_lea.sflag [#allocation4], 1
    %2272 = vsyncpa %s2271, 1
    %2273 = vsyncpa [#allocation7], 1
    %s2274 = scalar_lea.sflag [#allocation7], 1
    %2275 = vsyncpa %s2274, 1
    %2276 = vsyncpa [#allocation5], 1
    %s2277 = scalar_lea.sflag [#allocation5], 1
    %2278 = vsyncpa %s2277, 1

</llo_original>
